<compile_context>
chip_gen: v5e
topology: v5e:2x2
jax: 0.10.0
libtpu: 0.0.40
codegen_flags: <defaults>
</compile_context>

<pallas_src>
import functools

import jax
import jax.numpy as jnp
from jax.experimental import pallas as pl
from jax.experimental.pallas import tpu as pltpu

LEAKY_SLOPE = 0.01  # torch.nn.LeakyReLU default negative_slope


def _round_up(v, m):
    return ((v + m - 1) // m) * m


def _flat_pad_nchw(a, lf):
    """(N, C, H, W) -> (N, C, lf): 1-pixel zero border, row-major flatten, lane pad."""
    n, c, h, w = a.shape
    a = jnp.pad(a, ((0, 0), (0, 0), (1, 1), (1, 1)))
    a = a.reshape(n, c, (h + 2) * (w + 2))
    return jnp.pad(a, ((0, 0), (0, 0), (0, lf - a.shape[-1])))


# ----------------------------- Pallas kernels ------------------------------


def _prefft_kernel(xf_ref, wh_ref, bh_ref, w1_ref, b1_ref, mask_ref,
                   x1_ref, x2_ref, tf_ref, *, C, Wp, LO):
    """Fused pre-FFT chain in flat padded layout (spatial on lanes):
         t  = lrelu(conv3x3(x; rb1_w0))        (stays in VMEM)
         x2 = lrelu(conv3x3(x; rb2h_w))
         x1 = x + conv3x3(t; rb1_w1)
    """
    cdt = tf_ref.dtype
    # single K=9*C im2col matmul for both head convs (they share input x)
    slab = jnp.concatenate(
        [xf_ref[:, ky * Wp + kx: ky * Wp + kx + LO]
         for ky in range(3) for kx in range(3)], axis=0)            # (9C, LO)
    acc = jnp.dot(wh_ref[...], slab, preferred_element_type=jnp.float32)
    acc = acc + bh_ref[...]
    acc = jnp.where(acc >= 0, acc, LEAKY_SLOPE * acc)               # f32 LeakyReLU
    mask = mask_ref[...]                                            # (1, LO)
    t = acc[:C] * mask            # zero the 2 junk columns -> correct halo for conv2
    x2_ref[...] = acc[C:].astype(x2_ref.dtype)

    # branch-1 second conv: rebuild t's padded flat window in VMEM (never HBM)
    tf_ref[...] = jnp.zeros_like(tf_ref)
    tf_ref[:, Wp + 1: Wp + 1 + LO] = t.astype(cdt)
    slab2 = jnp.concatenate(
        [tf_ref[:, ky * Wp + kx: ky * Wp + kx + LO]
         for ky in range(3) for kx in range(3)], axis=0)            # (9C, LO)
    acc2 = jnp.dot(w1_ref[...], slab2, preferred_element_type=jnp.float32)
    acc2 = acc2 + b1_ref[...]
    # residual x in the same flat output layout (junk columns are zero padding)
    xres = xf_ref[:, Wp + 1: Wp + 1 + LO].astype(jnp.float32)
    x1_ref[...] = (xres + acc2).astype(x1_ref.dtype)


def _freq_kernel(yr_ref, yi_ref, w_ref, b_ref, or_ref, oi_ref, *, C, Wp, LO):
    """res_branch2_body conv on cat([real, imag]) without the HBM concat (f32)."""
    taps = []
    for ky in range(3):
        for kx in range(3):
            s = ky * Wp + kx
            taps.append(yr_ref[:, s:s + LO])
            taps.append(yi_ref[:, s:s + LO])
    slab = jnp.concatenate(taps, axis=0)                            # (18C, LO)
    acc = jnp.dot(w_ref[...], slab, preferred_element_type=jnp.float32)
    acc = acc + b_ref[...]
    acc = jnp.where(acc >= 0, acc, LEAKY_SLOPE * acc)
    or_ref[...] = acc[:C]
    oi_ref[...] = acc[C:]


def _tail_kernel(x1_ref, yv_ref, x2_ref, wa_ref, wb_ref, b_ref, o_ref):
    """Folded tail: out = wa^T x1 + wb^T (irfft(y) + x2) + b_fold."""
    acc = jnp.dot(wa_ref[...], x1_ref[...], preferred_element_type=jnp.float32)
    s = (yv_ref[...] + x2_ref[...]).astype(wb_ref.dtype)            # f32 add
    acc = acc + jnp.dot(wb_ref[...], s, preferred_element_type=jnp.float32)
    o_ref[...] = (acc + b_ref[...]).astype(o_ref.dtype)


# ------------------------------ SFB forward ---------------------------------


def sfb_forward(x_nchw, p, compute_dtype=jnp.bfloat16):
    N, C, H, W = x_nchw.shape
    out_ch = p["conv_w"].shape[-1]
    Hp, Wp = H + 2, W + 2
    LO = H * Wp                            # flat output length (2 junk cols / row)
    LF = _round_up(Hp * Wp + 2, 128)       # flat padded input length (lane pad)
    HW = H * W

    grid = (N,)
    cparams = pltpu.CompilerParams(dimension_semantics=("parallel",))

    def vspec(c, l):
        return pl.BlockSpec((None, c, l), lambda n: (n, 0, 0))

    def cspec(shape):
        return pl.BlockSpec(shape, lambda n, _s=len(shape): (0,) * _s)

    # ---- flat padded input: pad exactly once, in HBM, for the whole chain
    xpf = _flat_pad_nchw(x_nchw.astype(compute_dtype), LF)
    col_mask = (jnp.arange(LO, dtype=jnp.int32) % Wp < W)
    col_mask = col_mask.astype(jnp.float32).reshape(1, LO)

    # ---- im2col-transposed weights: (Cout, 9*Cin); head convs concatenated
    whT = jnp.concatenate([p["rb1_w0"], p["rb2h_w"]], axis=-1)
    whT = whT.reshape(9 * C, 2 * C).T.astype(compute_dtype)
    bh = jnp.concatenate([p["rb1_b0"], p["rb2h_b"]]).reshape(2 * C, 1)
    bh = bh.astype(jnp.float32)
    w1T = p["rb1_w1"].reshape(9 * C, C).T.astype(compute_dtype)
    b1 = p["rb1_b1"].reshape(C, 1).astype(jnp.float32)

    x1f, x2f = pl.pallas_call(
        functools.partial(_prefft_kernel, C=C, Wp=Wp, LO=LO),
        grid=grid,
        out_shape=(jax.ShapeDtypeStruct((N, C, LO), compute_dtype),
                   jax.ShapeDtypeStruct((N, C, LO), jnp.float32)),
        in_specs=[vspec(C, LF), cspec((2 * C, 9 * C)), cspec((2 * C, 1)),
                  cspec((C, 9 * C)), cspec((C, 1)), cspec((1, LO))],
        out_specs=(vspec(C, LO), vspec(C, LO)),
        scratch_shapes=[pltpu.VMEM((C, LF), compute_dtype)],
        compiler_params=cparams,
    )(xpf, whT, bh, w1T, b1, col_mask)

    # ---- FFT boundary (no Pallas FFT primitive): depad x2, keep it in f32
    # TODO(synk): rfft2/irfft2 have no Pallas TPU primitive; they stay in jnp.fft.
    x2 = x2f.reshape(N, C, H, Wp)[:, :, :, :W]                      # (N,C,H,W) f32
    y = jnp.fft.rfft2(x2, axes=(2, 3))
    Wf = W // 2 + 1
    Wfp = Wf + 2
    LOb = H * Wfp
    LFb = _round_up(Hp * Wfp + 2, 128)
    yrf = _flat_pad_nchw(jnp.real(y), LFb)
    yif = _flat_pad_nchw(jnp.imag(y), LFb)

    # frequency-domain conv weight: input channel order is (real..., imag...)
    wfT = p["rb2b_w"].reshape(9 * 2 * C, 2 * C).T.astype(jnp.float32)
    bf = p["rb2b_b"].reshape(2 * C, 1).astype(jnp.float32)

    ybr, ybi = pl.pallas_call(
        functools.partial(_freq_kernel, C=C, Wp=Wfp, LO=LOb),
        grid=grid,
        out_shape=(jax.ShapeDtypeStruct((N, C, LOb), jnp.float32),
                   jax.ShapeDtypeStruct((N, C, LOb), jnp.float32)),
        in_specs=[vspec(C, LFb), vspec(C, LFb),
                  cspec((2 * C, 18 * C)), cspec((2 * C, 1))],
        out_specs=(vspec(C, LOb), vspec(C, LOb)),
        compiler_params=cparams,
    )(yrf, yif, wfT, bf)

    ybr = ybr.reshape(N, C, H, Wfp)[:, :, :, :Wf]
    ybi = ybi.reshape(N, C, H, Wfp)[:, :, :, :Wf]
    yinv = jnp.fft.irfft2(jax.lax.complex(ybr, ybi), s=(H, W), axes=(2, 3))

    # ---- algebraically folded tail (both 1x1 convs + residual add, one kernel)
    waT = p["conv_w"][:C].T.astype(compute_dtype)                   # (out, C)
    wbT = (p["rb2t_w"] @ p["conv_w"][C:]).T.astype(compute_dtype)   # (out, C)
    bfold = (p["rb2t_b"] @ p["conv_w"][C:] + p["conv_b"])
    bfold = bfold.reshape(out_ch, 1).astype(jnp.float32)

    x1d = x1f.reshape(N, C, H, Wp)[:, :, :, :W].reshape(N, C, HW)
    x2d = x2.reshape(N, C, HW)
    yvd = yinv.reshape(N, C, HW)

    out = pl.pallas_call(
        _tail_kernel,
        grid=grid,
        out_shape=jax.ShapeDtypeStruct((N, out_ch, HW), jnp.float32),
        in_specs=[vspec(C, HW), vspec(C, HW), vspec(C, HW),
                  cspec((out_ch, C)), cspec((out_ch, C)), cspec((out_ch, 1))],
        out_specs=vspec(out_ch, HW),
        compiler_params=cparams,
    )(x1d, yvd, x2d, waT, wbT, bfold)
    return out.reshape(N, out_ch, H, W)                             # NCHW


# ------------------------- pure-JAX reference (check) ------------------------


def _ref_conv3x3(x, w_hwio, b):
    o = jax.lax.conv_general_dilated(
        x, w_hwio, (1, 1), padding=[(1, 1), (1, 1)],
        dimension_numbers=("NHWC", "HWIO", "NHWC"))
    return o + b[None, None, None, :]


def _lrelu(v):
    return jnp.where(v >= 0, v, LEAKY_SLOPE * v)


def sfb_reference(x_nchw, p):
    x = jnp.transpose(x_nchw, (0, 2, 3, 1))
    N, H, W, C = x.shape
    x1 = x + _ref_conv3x3(_lrelu(_ref_conv3x3(x, p["rb1_w0"], p["rb1_b0"])),
                          p["rb1_w1"], p["rb1_b1"])
    x2 = _lrelu(_ref_conv3x3(x, p["rb2h_w"], p["rb2h_b"]))
    y = jnp.fft.rfft2(x2, axes=(1, 2))
    yc = jnp.concatenate([jnp.real(y), jnp.imag(y)], axis=-1)
    yb = _lrelu(_ref_conv3x3(yc, p["rb2b_w"], p["rb2b_b"]))
    yr, yi = jnp.split(yb, 2, axis=-1)
    y = jnp.fft.irfft2(jax.lax.complex(yr, yi), s=(H, W), axes=(1, 2)).astype(x.dtype)
    x2 = y + x2
    x2 = jnp.einsum("nhwc,cd->nhwd", x2, p["rb2t_w"]) + p["rb2t_b"]
    xc = jnp.concatenate([x1, x2], axis=-1)
    out = jnp.einsum("nhwc,cd->nhwd", xc, p["conv_w"]) + p["conv_b"]
    return jnp.transpose(out, (0, 3, 1, 2))


# ---------------------------------- main ------------------------------------


def init_params(key, dim, out_ch):
    ks = jax.random.split(key, 12)
    s = 0.05

    def w(k, shape):
        return (s * jax.random.normal(k, shape)).astype(jnp.float32)

    return {
        # 3x3 weights stored as HWIO (kh, kw, Cin, Cout)
        "rb1_w0": w(ks[0], (3, 3, dim, dim)), "rb1_b0": w(ks[1], (dim,)),
        "rb1_w1": w(ks[2], (3, 3, dim, dim)), "rb1_b1": w(ks[3], (dim,)),
        "rb2h_w": w(ks[4], (3, 3, dim, dim)), "rb2h_b": w(ks[5], (dim,)),
        "rb2b_w": w(ks[6], (3, 3, 2 * dim, 2 * dim)), "rb2b_b": w(ks[7], (2 * dim,)),
        # 1x1 weights stored as (Cin, Cout)
        "rb2t_w": w(ks[8], (dim, dim)), "rb2t_b": w(ks[9], (dim,)),
        "conv_w": w(ks[10], (2 * dim, out_ch)), "conv_b": w(ks[11], (out_ch,)),
    }


if __name__ == "__main__":
    key = jax.random.PRNGKey(0)
    kp, kx = jax.random.split(key)
    N, dim, out_ch, H, W = 2, 8, 8, 16, 16

    params = init_params(kp, dim, out_ch)
    x = jax.random.normal(kx, (N, dim, H, W), dtype=jnp.float32)  # NCHW

    ref = jax.block_until_ready(sfb_reference(x, params))

    fwd = jax.jit(sfb_forward, static_argnames=("compute_dtype",))

    # exact-math check with a float32 compute path
    out_f32 = jax.block_until_ready(fwd(x, params, compute_dtype=jnp.float32))
    assert out_f32.shape == (N, out_ch, H, W), out_f32.shape
    err32 = float(jnp.max(jnp.abs(out_f32 - ref)))
    assert jnp.allclose(out_f32, ref, atol=1e-3, rtol=1e-3), err32

    # optimized bf16 MXU path (f32 accumulation, f32 frequency-domain conv)
    out_bf16 = jax.block_until_ready(fwd(x, params, compute_dtype=jnp.bfloat16))
    assert out_bf16.shape == (N, out_ch, H, W), out_bf16.shape
    err16 = float(jnp.max(jnp.abs(out_bf16 - ref)))
    assert jnp.allclose(out_bf16, ref, atol=5e-2, rtol=5e-2), err16

    print("KERNEL_OK")
</pallas_src>

<mosaic_0001>
module attributes {stable_mosaic.version = 11 : i64} {
  func.func @_prefft_kernel(%arg0: i32, %arg1: memref<1x8x384xf32, #tpu.memory_space<vmem>>, %arg2: memref<16x72xf32, #tpu.memory_space<vmem>>, %arg3: memref<16x1xf32, #tpu.memory_space<vmem>>, %arg4: memref<8x72xf32, #tpu.memory_space<vmem>>, %arg5: memref<8x1xf32, #tpu.memory_space<vmem>>, %arg6: memref<1x288xf32, #tpu.memory_space<vmem>>, %arg7: memref<1x8x288xf32, #tpu.memory_space<vmem>>, %arg8: memref<1x8x288xf32, #tpu.memory_space<vmem>>, %arg9: memref<8x384xf32, #tpu.memory_space<vmem>>) attributes {dimension_semantics = [#tpu.dimension_semantics<parallel>], iteration_bounds = array<i64: 2>, scalar_prefetch = 0 : i64, scratch_operands = 1 : i64, tpu.core_type = #tpu.core_type<tc>, window_params = [{transform_indices = @transform_0, window_bounds = array<i64: 1, 8, 384>}, {pipeline_mode = #tpu.pipeline_mode<synchronous>, transform_indices = @transform_1, window_bounds = array<i64: 16, 72>}, {pipeline_mode = #tpu.pipeline_mode<synchronous>, transform_indices = @transform_2, window_bounds = array<i64: 16, 1>}, {pipeline_mode = #tpu.pipeline_mode<synchronous>, transform_indices = @transform_3, window_bounds = array<i64: 8, 72>}, {pipeline_mode = #tpu.pipeline_mode<synchronous>, transform_indices = @transform_4, window_bounds = array<i64: 8, 1>}, {pipeline_mode = #tpu.pipeline_mode<synchronous>, transform_indices = @transform_5, window_bounds = array<i64: 1, 288>}, {transform_indices = @transform_6, window_bounds = array<i64: 1, 8, 288>}, {transform_indices = @transform_7, window_bounds = array<i64: 1, 8, 288>}]} {
    %c0 = arith.constant 0 : index
    %c0_0 = arith.constant 0 : index
    %c0_1 = arith.constant 0 : index
    %0 = vector.load %arg1[%c0, %c0_0, %c0_1] : memref<1x8x384xf32, #tpu.memory_space<vmem>>, vector<1x8x288xf32>
    %1 = vector.shape_cast %0 : vector<1x8x288xf32> to vector<8x288xf32>
    %c0_2 = arith.constant 0 : index
    %c0_3 = arith.constant 0 : index
    %c1 = arith.constant 1 : index
    %2 = vector.load %arg1[%c0_2, %c0_3, %c1] : memref<1x8x384xf32, #tpu.memory_space<vmem>>, vector<1x8x288xf32>
    %3 = vector.shape_cast %2 : vector<1x8x288xf32> to vector<8x288xf32>
    %c0_4 = arith.constant 0 : index
    %c0_5 = arith.constant 0 : index
    %c2 = arith.constant 2 : index
    %4 = vector.load %arg1[%c0_4, %c0_5, %c2] : memref<1x8x384xf32, #tpu.memory_space<vmem>>, vector<1x8x288xf32>
    %5 = vector.shape_cast %4 : vector<1x8x288xf32> to vector<8x288xf32>
    %c0_6 = arith.constant 0 : index
    %c0_7 = arith.constant 0 : index
    %c18 = arith.constant 18 : index
    %6 = vector.load %arg1[%c0_6, %c0_7, %c18] : memref<1x8x384xf32, #tpu.memory_space<vmem>>, vector<1x8x288xf32>
    %7 = vector.shape_cast %6 : vector<1x8x288xf32> to vector<8x288xf32>
    %c0_8 = arith.constant 0 : index
    %c0_9 = arith.constant 0 : index
    %c19 = arith.constant 19 : index
    %8 = vector.load %arg1[%c0_8, %c0_9, %c19] : memref<1x8x384xf32, #tpu.memory_space<vmem>>, vector<1x8x288xf32>
    %9 = vector.shape_cast %8 : vector<1x8x288xf32> to vector<8x288xf32>
    %c0_10 = arith.constant 0 : index
    %c0_11 = arith.constant 0 : index
    %c20 = arith.constant 20 : index
    %10 = vector.load %arg1[%c0_10, %c0_11, %c20] : memref<1x8x384xf32, #tpu.memory_space<vmem>>, vector<1x8x288xf32>
    %11 = vector.shape_cast %10 : vector<1x8x288xf32> to vector<8x288xf32>
    %c0_12 = arith.constant 0 : index
    %c0_13 = arith.constant 0 : index
    %c36 = arith.constant 36 : index
    %12 = vector.load %arg1[%c0_12, %c0_13, %c36] : memref<1x8x384xf32, #tpu.memory_space<vmem>>, vector<1x8x288xf32>
    %13 = vector.shape_cast %12 : vector<1x8x288xf32> to vector<8x288xf32>
    %c0_14 = arith.constant 0 : index
    %c0_15 = arith.constant 0 : index
    %c37 = arith.constant 37 : index
    %14 = vector.load %arg1[%c0_14, %c0_15, %c37] : memref<1x8x384xf32, #tpu.memory_space<vmem>>, vector<1x8x288xf32>
    %15 = vector.shape_cast %14 : vector<1x8x288xf32> to vector<8x288xf32>
    %c0_16 = arith.constant 0 : index
    %c0_17 = arith.constant 0 : index
    %c38 = arith.constant 38 : index
    %16 = vector.load %arg1[%c0_16, %c0_17, %c38] : memref<1x8x384xf32, #tpu.memory_space<vmem>>, vector<1x8x288xf32>
    %17 = vector.shape_cast %16 : vector<1x8x288xf32> to vector<8x288xf32>
    %18 = tpu.concatenate %1, %3, %5, %7, %9, %11, %13, %15, %17 in 0 : vector<8x288xf32>, vector<8x288xf32>, vector<8x288xf32>, vector<8x288xf32>, vector<8x288xf32>, vector<8x288xf32>, vector<8x288xf32>, vector<8x288xf32>, vector<8x288xf32> -> vector<72x288xf32>
    %c0_18 = arith.constant 0 : index
    %c0_19 = arith.constant 0 : index
    %19 = vector.load %arg2[%c0_18, %c0_19] : memref<16x72xf32, #tpu.memory_space<vmem>>, vector<16x72xf32>
    %cst = arith.constant dense<0.000000e+00> : vector<16x288xf32>
    %20 = tpu.matmul %19, %18, %cst {dimension_numbers = #tpu.dot_dimension_numbers<[1], [0], [0], [1], [0, 0, 1, 1], [], []>} : vector<16x72xf32>, vector<72x288xf32>, vector<16x288xf32> -> vector<16x288xf32>
    %c0_20 = arith.constant 0 : index
    %c0_21 = arith.constant 0 : index
    %21 = vector.load %arg3[%c0_20, %c0_21] : memref<16x1xf32, #tpu.memory_space<vmem>>, vector<16x1xf32>
    %22 = vector.broadcast %21 : vector<16x1xf32> to vector<16x288xf32>
    %23 = arith.addf %20, %22 : vector<16x288xf32>
    %cst_22 = arith.constant 0.000000e+00 : f32
    %24 = vector.broadcast %cst_22 : f32 to vector<16x288xf32>
    %25 = arith.cmpf oge, %23, %24 : vector<16x288xf32>
    %cst_23 = arith.constant 0.00999999977 : f32
    %26 = vector.broadcast %cst_23 : f32 to vector<16x288xf32>
    %27 = arith.mulf %26, %23 : vector<16x288xf32>
    %28 = arith.select %25, %23, %27 : vector<16x288xi1>, vector<16x288xf32>
    %c0_24 = arith.constant 0 : index
    %c0_25 = arith.constant 0 : index
    %29 = vector.load %arg6[%c0_24, %c0_25] : memref<1x288xf32, #tpu.memory_space<vmem>>, vector<1x288xf32>
    %30 = vector.extract_strided_slice %28 {offsets = [0, 0], sizes = [8, 288], strides = [1, 1]} : vector<16x288xf32> to vector<8x288xf32>
    %31 = vector.broadcast %29 : vector<1x288xf32> to vector<8x288xf32>
    %32 = arith.mulf %30, %31 : vector<8x288xf32>
    %33 = vector.extract_strided_slice %28 {offsets = [8, 0], sizes = [8, 288], strides = [1, 1]} : vector<16x288xf32> to vector<8x288xf32>
    %c0_26 = arith.constant 0 : index
    %c0_27 = arith.constant 0 : index
    %c0_28 = arith.constant 0 : index
    %34 = vector.load %arg8[%c0_26, %c0_27, %c0_28] : memref<1x8x288xf32, #tpu.memory_space<vmem>>, vector<1x8x288xf32>
    %35 = vector.shape_cast %34 : vector<1x8x288xf32> to vector<8x288xf32>
    %36 = vector.shape_cast %33 : vector<8x288xf32> to vector<1x8x288xf32>
    tpu.vector_store %arg8[%c0_26, %c0_27, %c0_28], %36 {strides = array<i32>} : memref<1x8x288xf32, #tpu.memory_space<vmem>>, vector<1x8x288xf32>,
    %cst_29 = arith.constant 0.000000e+00 : f32
    %37 = vector.broadcast %cst_29 : f32 to vector<8x384xf32>
    %c0_30 = arith.constant 0 : index
    %c0_31 = arith.constant 0 : index
    %38 = vector.load %arg9[%c0_30, %c0_31] : memref<8x384xf32, #tpu.memory_space<vmem>>, vector<8x384xf32>
    tpu.vector_store %arg9[%c0_30, %c0_31], %37 {strides = array<i32>} : memref<8x384xf32, #tpu.memory_space<vmem>>, vector<8x384xf32>,
    %c0_32 = arith.constant 0 : index
    %c19_33 = arith.constant 19 : index
    %39 = vector.load %arg9[%c0_32, %c19_33] : memref<8x384xf32, #tpu.memory_space<vmem>>, vector<8x288xf32>
    tpu.vector_store %arg9[%c0_32, %c19_33], %32 {strides = array<i32>} : memref<8x384xf32, #tpu.memory_space<vmem>>, vector<8x288xf32>,
    %c0_34 = arith.constant 0 : index
    %c0_35 = arith.constant 0 : index
    %40 = vector.load %arg9[%c0_34, %c0_35] : memref<8x384xf32, #tpu.memory_space<vmem>>, vector<8x288xf32>
    %c0_36 = arith.constant 0 : index
    %c1_37 = arith.constant 1 : index
    %41 = vector.load %arg9[%c0_36, %c1_37] : memref<8x384xf32, #tpu.memory_space<vmem>>, vector<8x288xf32>
    %c0_38 = arith.constant 0 : index
    %c2_39 = arith.constant 2 : index
    %42 = vector.load %arg9[%c0_38, %c2_39] : memref<8x384xf32, #tpu.memory_space<vmem>>, vector<8x288xf32>
    %c0_40 = arith.constant 0 : index
    %c18_41 = arith.constant 18 : index
    %43 = vector.load %arg9[%c0_40, %c18_41] : memref<8x384xf32, #tpu.memory_space<vmem>>, vector<8x288xf32>
    %c0_42 = arith.constant 0 : index
    %c19_43 = arith.constant 19 : index
    %44 = vector.load %arg9[%c0_42, %c19_43] : memref<8x384xf32, #tpu.memory_space<vmem>>, vector<8x288xf32>
    %c0_44 = arith.constant 0 : index
    %c20_45 = arith.constant 20 : index
    %45 = vector.load %arg9[%c0_44, %c20_45] : memref<8x384xf32, #tpu.memory_space<vmem>>, vector<8x288xf32>
    %c0_46 = arith.constant 0 : index
    %c36_47 = arith.constant 36 : index
    %46 = vector.load %arg9[%c0_46, %c36_47] : memref<8x384xf32, #tpu.memory_space<vmem>>, vector<8x288xf32>
    %c0_48 = arith.constant 0 : index
    %c37_49 = arith.constant 37 : index
    %47 = vector.load %arg9[%c0_48, %c37_49] : memref<8x384xf32, #tpu.memory_space<vmem>>, vector<8x288xf32>
    %c0_50 = arith.constant 0 : index
    %c38_51 = arith.constant 38 : index
    %48 = vector.load %arg9[%c0_50, %c38_51] : memref<8x384xf32, #tpu.memory_space<vmem>>, vector<8x288xf32>
    %49 = tpu.concatenate %40, %41, %42, %43, %44, %45, %46, %47, %48 in 0 : vector<8x288xf32>, vector<8x288xf32>, vector<8x288xf32>, vector<8x288xf32>, vector<8x288xf32>, vector<8x288xf32>, vector<8x288xf32>, vector<8x288xf32>, vector<8x288xf32> -> vector<72x288xf32>
    %c0_52 = arith.constant 0 : index
    %c0_53 = arith.constant 0 : index
    %50 = vector.load %arg4[%c0_52, %c0_53] : memref<8x72xf32, #tpu.memory_space<vmem>>, vector<8x72xf32>
    %cst_54 = arith.constant dense<0.000000e+00> : vector<8x288xf32>
    %51 = tpu.matmul %50, %49, %cst_54 {dimension_numbers = #tpu.dot_dimension_numbers<[1], [0], [0], [1], [0, 0, 1, 1], [], []>} : vector<8x72xf32>, vector<72x288xf32>, vector<8x288xf32> -> vector<8x288xf32>
    %c0_55 = arith.constant 0 : index
    %c0_56 = arith.constant 0 : index
    %52 = vector.load %arg5[%c0_55, %c0_56] : memref<8x1xf32, #tpu.memory_space<vmem>>, vector<8x1xf32>
    %53 = vector.broadcast %52 : vector<8x1xf32> to vector<8x288xf32>
    %54 = arith.addf %51, %53 : vector<8x288xf32>
    %c0_57 = arith.constant 0 : index
    %c0_58 = arith.constant 0 : index
    %c19_59 = arith.constant 19 : index
    %55 = vector.load %arg1[%c0_57, %c0_58, %c19_59] : memref<1x8x384xf32, #tpu.memory_space<vmem>>, vector<1x8x288xf32>
    %56 = vector.shape_cast %55 : vector<1x8x288xf32> to vector<8x288xf32>
    %57 = arith.addf %56, %54 : vector<8x288xf32>
    %c0_60 = arith.constant 0 : index
    %c0_61 = arith.constant 0 : index
    %c0_62 = arith.constant 0 : index
    %58 = vector.load %arg7[%c0_60, %c0_61, %c0_62] : memref<1x8x288xf32, #tpu.memory_space<vmem>>, vector<1x8x288xf32>
    %59 = vector.shape_cast %58 : vector<1x8x288xf32> to vector<8x288xf32>
    %60 = vector.shape_cast %57 : vector<8x288xf32> to vector<1x8x288xf32>
    tpu.vector_store %arg7[%c0_60, %c0_61, %c0_62], %60 {strides = array<i32>} : memref<1x8x288xf32, #tpu.memory_space<vmem>>, vector<1x8x288xf32>,
    return
  }
  func.func @transform_0(%arg0: i32) -> (i32, i32, i32) {
    %c0_i32 = arith.constant 0 : i32
    %c0_i32_0 = arith.constant 0 : i32
    %c0_i32_1 = arith.constant 0 : i32
    return %arg0, %c0_i32, %c0_i32_0 : i32, i32, i32
  }
  func.func @transform_1(%arg0: i32) -> (i32, i32) {
    %c0_i32 = arith.constant 0 : i32
    %c0_i32_0 = arith.constant 0 : i32
    %c0_i32_1 = arith.constant 0 : i32
    return %c0_i32, %c0_i32_0 : i32, i32
  }
  func.func @transform_2(%arg0: i32) -> (i32, i32) {
    %c0_i32 = arith.constant 0 : i32
    %c0_i32_0 = arith.constant 0 : i32
    %c0_i32_1 = arith.constant 0 : i32
    return %c0_i32, %c0_i32_0 : i32, i32
  }
  func.func @transform_3(%arg0: i32) -> (i32, i32) {
    %c0_i32 = arith.constant 0 : i32
    %c0_i32_0 = arith.constant 0 : i32
    %c0_i32_1 = arith.constant 0 : i32
    return %c0_i32, %c0_i32_0 : i32, i32
  }
  func.func @transform_4(%arg0: i32) -> (i32, i32) {
    %c0_i32 = arith.constant 0 : i32
    %c0_i32_0 = arith.constant 0 : i32
    %c0_i32_1 = arith.constant 0 : i32
    return %c0_i32, %c0_i32_0 : i32, i32
  }
  func.func @transform_5(%arg0: i32) -> (i32, i32) {
    %c0_i32 = arith.constant 0 : i32
    %c0_i32_0 = arith.constant 0 : i32
    %c0_i32_1 = arith.constant 0 : i32
    return %c0_i32, %c0_i32_0 : i32, i32
  }
  func.func @transform_6(%arg0: i32) -> (i32, i32, i32) {
    %c0_i32 = arith.constant 0 : i32
    %c0_i32_0 = arith.constant 0 : i32
    %c0_i32_1 = arith.constant 0 : i32
    return %arg0, %c0_i32, %c0_i32_0 : i32, i32, i32
  }
  func.func @transform_7(%arg0: i32) -> (i32, i32, i32) {
    %c0_i32 = arith.constant 0 : i32
    %c0_i32_0 = arith.constant 0 : i32
    %c0_i32_1 = arith.constant 0 : i32
    return %arg0, %c0_i32, %c0_i32_0 : i32, i32, i32
  }
}

module attributes {stable_mosaic.version = 11 : i64} {
  func.func @_freq_kernel(%arg0: i32, %arg1: memref<1x8x256xf32, #tpu.memory_space<vmem>>, %arg2: memref<1x8x256xf32, #tpu.memory_space<vmem>>, %arg3: memref<16x144xf32, #tpu.memory_space<vmem>>, %arg4: memref<16x1xf32, #tpu.memory_space<vmem>>, %arg5: memref<1x8x176xf32, #tpu.memory_space<vmem>>, %arg6: memref<1x8x176xf32, #tpu.memory_space<vmem>>) attributes {dimension_semantics = [#tpu.dimension_semantics<parallel>], iteration_bounds = array<i64: 2>, scalar_prefetch = 0 : i64, scratch_operands = 0 : i64, tpu.core_type = #tpu.core_type<tc>, window_params = [{transform_indices = @transform_0, window_bounds = array<i64: 1, 8, 256>}, {transform_indices = @transform_1, window_bounds = array<i64: 1, 8, 256>}, {pipeline_mode = #tpu.pipeline_mode<synchronous>, transform_indices = @transform_2, window_bounds = array<i64: 16, 144>}, {pipeline_mode = #tpu.pipeline_mode<synchronous>, transform_indices = @transform_3, window_bounds = array<i64: 16, 1>}, {transform_indices = @transform_4, window_bounds = array<i64: 1, 8, 176>}, {transform_indices = @transform_5, window_bounds = array<i64: 1, 8, 176>}]} {
    %c0 = arith.constant 0 : index
    %c0_0 = arith.constant 0 : index
    %c0_1 = arith.constant 0 : index
    %0 = vector.load %arg1[%c0, %c0_0, %c0_1] : memref<1x8x256xf32, #tpu.memory_space<vmem>>, vector<1x8x176xf32>
    %1 = vector.shape_cast %0 : vector<1x8x176xf32> to vector<8x176xf32>
    %c0_2 = arith.constant 0 : index
    %c0_3 = arith.constant 0 : index
    %c0_4 = arith.constant 0 : index
    %2 = vector.load %arg2[%c0_2, %c0_3, %c0_4] : memref<1x8x256xf32, #tpu.memory_space<vmem>>, vector<1x8x176xf32>
    %3 = vector.shape_cast %2 : vector<1x8x176xf32> to vector<8x176xf32>
    %c0_5 = arith.constant 0 : index
    %c0_6 = arith.constant 0 : index
    %c1 = arith.constant 1 : index
    %4 = vector.load %arg1[%c0_5, %c0_6, %c1] : memref<1x8x256xf32, #tpu.memory_space<vmem>>, vector<1x8x176xf32>
    %5 = vector.shape_cast %4 : vector<1x8x176xf32> to vector<8x176xf32>
    %c0_7 = arith.constant 0 : index
    %c0_8 = arith.constant 0 : index
    %c1_9 = arith.constant 1 : index
    %6 = vector.load %arg2[%c0_7, %c0_8, %c1_9] : memref<1x8x256xf32, #tpu.memory_space<vmem>>, vector<1x8x176xf32>
    %7 = vector.shape_cast %6 : vector<1x8x176xf32> to vector<8x176xf32>
    %c0_10 = arith.constant 0 : index
    %c0_11 = arith.constant 0 : index
    %c2 = arith.constant 2 : index
    %8 = vector.load %arg1[%c0_10, %c0_11, %c2] : memref<1x8x256xf32, #tpu.memory_space<vmem>>, vector<1x8x176xf32>
    %9 = vector.shape_cast %8 : vector<1x8x176xf32> to vector<8x176xf32>
    %c0_12 = arith.constant 0 : index
    %c0_13 = arith.constant 0 : index
    %c2_14 = arith.constant 2 : index
    %10 = vector.load %arg2[%c0_12, %c0_13, %c2_14] : memref<1x8x256xf32, #tpu.memory_space<vmem>>, vector<1x8x176xf32>
    %11 = vector.shape_cast %10 : vector<1x8x176xf32> to vector<8x176xf32>
    %c0_15 = arith.constant 0 : index
    %c0_16 = arith.constant 0 : index
    %c11 = arith.constant 11 : index
    %12 = vector.load %arg1[%c0_15, %c0_16, %c11] : memref<1x8x256xf32, #tpu.memory_space<vmem>>, vector<1x8x176xf32>
    %13 = vector.shape_cast %12 : vector<1x8x176xf32> to vector<8x176xf32>
    %c0_17 = arith.constant 0 : index
    %c0_18 = arith.constant 0 : index
    %c11_19 = arith.constant 11 : index
    %14 = vector.load %arg2[%c0_17, %c0_18, %c11_19] : memref<1x8x256xf32, #tpu.memory_space<vmem>>, vector<1x8x176xf32>
    %15 = vector.shape_cast %14 : vector<1x8x176xf32> to vector<8x176xf32>
    %c0_20 = arith.constant 0 : index
    %c0_21 = arith.constant 0 : index
    %c12 = arith.constant 12 : index
    %16 = vector.load %arg1[%c0_20, %c0_21, %c12] : memref<1x8x256xf32, #tpu.memory_space<vmem>>, vector<1x8x176xf32>
    %17 = vector.shape_cast %16 : vector<1x8x176xf32> to vector<8x176xf32>
    %c0_22 = arith.constant 0 : index
    %c0_23 = arith.constant 0 : index
    %c12_24 = arith.constant 12 : index
    %18 = vector.load %arg2[%c0_22, %c0_23, %c12_24] : memref<1x8x256xf32, #tpu.memory_space<vmem>>, vector<1x8x176xf32>
    %19 = vector.shape_cast %18 : vector<1x8x176xf32> to vector<8x176xf32>
    %c0_25 = arith.constant 0 : index
    %c0_26 = arith.constant 0 : index
    %c13 = arith.constant 13 : index
    %20 = vector.load %arg1[%c0_25, %c0_26, %c13] : memref<1x8x256xf32, #tpu.memory_space<vmem>>, vector<1x8x176xf32>
    %21 = vector.shape_cast %20 : vector<1x8x176xf32> to vector<8x176xf32>
    %c0_27 = arith.constant 0 : index
    %c0_28 = arith.constant 0 : index
    %c13_29 = arith.constant 13 : index
    %22 = vector.load %arg2[%c0_27, %c0_28, %c13_29] : memref<1x8x256xf32, #tpu.memory_space<vmem>>, vector<1x8x176xf32>
    %23 = vector.shape_cast %22 : vector<1x8x176xf32> to vector<8x176xf32>
    %c0_30 = arith.constant 0 : index
    %c0_31 = arith.constant 0 : index
    %c22 = arith.constant 22 : index
    %24 = vector.load %arg1[%c0_30, %c0_31, %c22] : memref<1x8x256xf32, #tpu.memory_space<vmem>>, vector<1x8x176xf32>
    %25 = vector.shape_cast %24 : vector<1x8x176xf32> to vector<8x176xf32>
    %c0_32 = arith.constant 0 : index
    %c0_33 = arith.constant 0 : index
    %c22_34 = arith.constant 22 : index
    %26 = vector.load %arg2[%c0_32, %c0_33, %c22_34] : memref<1x8x256xf32, #tpu.memory_space<vmem>>, vector<1x8x176xf32>
    %27 = vector.shape_cast %26 : vector<1x8x176xf32> to vector<8x176xf32>
    %c0_35 = arith.constant 0 : index
    %c0_36 = arith.constant 0 : index
    %c23 = arith.constant 23 : index
    %28 = vector.load %arg1[%c0_35, %c0_36, %c23] : memref<1x8x256xf32, #tpu.memory_space<vmem>>, vector<1x8x176xf32>
    %29 = vector.shape_cast %28 : vector<1x8x176xf32> to vector<8x176xf32>
    %c0_37 = arith.constant 0 : index
    %c0_38 = arith.constant 0 : index
    %c23_39 = arith.constant 23 : index
    %30 = vector.load %arg2[%c0_37, %c0_38, %c23_39] : memref<1x8x256xf32, #tpu.memory_space<vmem>>, vector<1x8x176xf32>
    %31 = vector.shape_cast %30 : vector<1x8x176xf32> to vector<8x176xf32>
    %c0_40 = arith.constant 0 : index
    %c0_41 = arith.constant 0 : index
    %c24 = arith.constant 24 : index
    %32 = vector.load %arg1[%c0_40, %c0_41, %c24] : memref<1x8x256xf32, #tpu.memory_space<vmem>>, vector<1x8x176xf32>
    %33 = vector.shape_cast %32 : vector<1x8x176xf32> to vector<8x176xf32>
    %c0_42 = arith.constant 0 : index
    %c0_43 = arith.constant 0 : index
    %c24_44 = arith.constant 24 : index
    %34 = vector.load %arg2[%c0_42, %c0_43, %c24_44] : memref<1x8x256xf32, #tpu.memory_space<vmem>>, vector<1x8x176xf32>
    %35 = vector.shape_cast %34 : vector<1x8x176xf32> to vector<8x176xf32>
    %36 = tpu.concatenate %1, %3, %5, %7, %9, %11, %13, %15, %17, %19, %21, %23, %25, %27, %29, %31 in 0 : vector<8x176xf32>, vector<8x176xf32>, vector<8x176xf32>, vector<8x176xf32>, vector<8x176xf32>, vector<8x176xf32>, vector<8x176xf32>, vector<8x176xf32>, vector<8x176xf32>, vector<8x176xf32>, vector<8x176xf32>, vector<8x176xf32>, vector<8x176xf32>, vector<8x176xf32>, vector<8x176xf32>, vector<8x176xf32> -> vector<128x176xf32>
    %37 = tpu.concatenate %33, %35 in 0 : vector<8x176xf32>, vector<8x176xf32> -> vector<16x176xf32>
    %38 = tpu.concatenate %36, %37 in 0 : vector<128x176xf32>, vector<16x176xf32> -> vector<144x176xf32>
    %c0_45 = arith.constant 0 : index
    %c0_46 = arith.constant 0 : index
    %39 = vector.load %arg3[%c0_45, %c0_46] : memref<16x144xf32, #tpu.memory_space<vmem>>, vector<16x144xf32>
    %cst = arith.constant dense<0.000000e+00> : vector<16x176xf32>
    %40 = tpu.matmul %39, %38, %cst {dimension_numbers = #tpu.dot_dimension_numbers<[1], [0], [0], [1], [0, 0, 1, 1], [], []>} : vector<16x144xf32>, vector<144x176xf32>, vector<16x176xf32> -> vector<16x176xf32>
    %c0_47 = arith.constant 0 : index
    %c0_48 = arith.constant 0 : index
    %41 = vector.load %arg4[%c0_47, %c0_48] : memref<16x1xf32, #tpu.memory_space<vmem>>, vector<16x1xf32>
    %42 = vector.broadcast %41 : vector<16x1xf32> to vector<16x176xf32>
    %43 = arith.addf %40, %42 : vector<16x176xf32>
    %cst_49 = arith.constant 0.000000e+00 : f32
    %44 = vector.broadcast %cst_49 : f32 to vector<16x176xf32>
    %45 = arith.cmpf oge, %43, %44 : vector<16x176xf32>
    %cst_50 = arith.constant 0.00999999977 : f32
    %46 = vector.broadcast %cst_50 : f32 to vector<16x176xf32>
    %47 = arith.mulf %46, %43 : vector<16x176xf32>
    %48 = arith.select %45, %43, %47 : vector<16x176xi1>, vector<16x176xf32>
    %49 = vector.extract_strided_slice %48 {offsets = [0, 0], sizes = [8, 176], strides = [1, 1]} : vector<16x176xf32> to vector<8x176xf32>
    %c0_51 = arith.constant 0 : index
    %c0_52 = arith.constant 0 : index
    %c0_53 = arith.constant 0 : index
    %50 = vector.load %arg5[%c0_51, %c0_52, %c0_53] : memref<1x8x176xf32, #tpu.memory_space<vmem>>, vector<1x8x176xf32>
    %51 = vector.shape_cast %50 : vector<1x8x176xf32> to vector<8x176xf32>
    %52 = vector.shape_cast %49 : vector<8x176xf32> to vector<1x8x176xf32>
    tpu.vector_store %arg5[%c0_51, %c0_52, %c0_53], %52 {strides = array<i32>} : memref<1x8x176xf32, #tpu.memory_space<vmem>>, vector<1x8x176xf32>,
    %53 = vector.extract_strided_slice %48 {offsets = [8, 0], sizes = [8, 176], strides = [1, 1]} : vector<16x176xf32> to vector<8x176xf32>
    %c0_54 = arith.constant 0 : index
    %c0_55 = arith.constant 0 : index
    %c0_56 = arith.constant 0 : index
    %54 = vector.load %arg6[%c0_54, %c0_55, %c0_56] : memref<1x8x176xf32, #tpu.memory_space<vmem>>, vector<1x8x176xf32>
    %55 = vector.shape_cast %54 : vector<1x8x176xf32> to vector<8x176xf32>
    %56 = vector.shape_cast %53 : vector<8x176xf32> to vector<1x8x176xf32>
    tpu.vector_store %arg6[%c0_54, %c0_55, %c0_56], %56 {strides = array<i32>} : memref<1x8x176xf32, #tpu.memory_space<vmem>>, vector<1x8x176xf32>,
    return
  }
  func.func @transform_0(%arg0: i32) -> (i32, i32, i32) {
    %c0_i32 = arith.constant 0 : i32
    %c0_i32_0 = arith.constant 0 : i32
    %c0_i32_1 = arith.constant 0 : i32
    return %arg0, %c0_i32, %c0_i32_0 : i32, i32, i32
  }
  func.func @transform_1(%arg0: i32) -> (i32, i32, i32) {
    %c0_i32 = arith.constant 0 : i32
    %c0_i32_0 = arith.constant 0 : i32
    %c0_i32_1 = arith.constant 0 : i32
    return %arg0, %c0_i32, %c0_i32_0 : i32, i32, i32
  }
  func.func @transform_2(%arg0: i32) -> (i32, i32) {
    %c0_i32 = arith.constant 0 : i32
    %c0_i32_0 = arith.constant 0 : i32
    %c0_i32_1 = arith.constant 0 : i32
    return %c0_i32, %c0_i32_0 : i32, i32
  }
  func.func @transform_3(%arg0: i32) -> (i32, i32) {
    %c0_i32 = arith.constant 0 : i32
    %c0_i32_0 = arith.constant 0 : i32
    %c0_i32_1 = arith.constant 0 : i32
    return %c0_i32, %c0_i32_0 : i32, i32
  }
  func.func @transform_4(%arg0: i32) -> (i32, i32, i32) {
    %c0_i32 = arith.constant 0 : i32
    %c0_i32_0 = arith.constant 0 : i32
    %c0_i32_1 = arith.constant 0 : i32
    return %arg0, %c0_i32, %c0_i32_0 : i32, i32, i32
  }
  func.func @transform_5(%arg0: i32) -> (i32, i32, i32) {
    %c0_i32 = arith.constant 0 : i32
    %c0_i32_0 = arith.constant 0 : i32
    %c0_i32_1 = arith.constant 0 : i32
    return %arg0, %c0_i32, %c0_i32_0 : i32, i32, i32
  }
}

module attributes {stable_mosaic.version = 11 : i64} {
  func.func @_tail_kernel(%arg0: i32, %arg1: memref<1x8x256xf32, #tpu.memory_space<vmem>>, %arg2: memref<1x8x256xf32, #tpu.memory_space<vmem>>, %arg3: memref<1x8x256xf32, #tpu.memory_space<vmem>>, %arg4: memref<8x8xf32, #tpu.memory_space<vmem>>, %arg5: memref<8x8xf32, #tpu.memory_space<vmem>>, %arg6: memref<8x1xf32, #tpu.memory_space<vmem>>, %arg7: memref<1x8x256xf32, #tpu.memory_space<vmem>>) attributes {dimension_semantics = [#tpu.dimension_semantics<parallel>], iteration_bounds = array<i64: 2>, scalar_prefetch = 0 : i64, scratch_operands = 0 : i64, tpu.core_type = #tpu.core_type<tc>, window_params = [{transform_indices = @transform_0, window_bounds = array<i64: 1, 8, 256>}, {transform_indices = @transform_1, window_bounds = array<i64: 1, 8, 256>}, {transform_indices = @transform_2, window_bounds = array<i64: 1, 8, 256>}, {pipeline_mode = #tpu.pipeline_mode<synchronous>, transform_indices = @transform_3, window_bounds = array<i64: 8, 8>}, {pipeline_mode = #tpu.pipeline_mode<synchronous>, transform_indices = @transform_4, window_bounds = array<i64: 8, 8>}, {pipeline_mode = #tpu.pipeline_mode<synchronous>, transform_indices = @transform_5, window_bounds = array<i64: 8, 1>}, {transform_indices = @transform_6, window_bounds = array<i64: 1, 8, 256>}]} {
    %c0 = arith.constant 0 : index
    %c0_0 = arith.constant 0 : index
    %0 = vector.load %arg4[%c0, %c0_0] : memref<8x8xf32, #tpu.memory_space<vmem>>, vector<8x8xf32>
    %c0_1 = arith.constant 0 : index
    %c0_2 = arith.constant 0 : index
    %c0_3 = arith.constant 0 : index
    %1 = vector.load %arg1[%c0_1, %c0_2, %c0_3] : memref<1x8x256xf32, #tpu.memory_space<vmem>>, vector<1x8x256xf32>
    %2 = vector.shape_cast %1 : vector<1x8x256xf32> to vector<8x256xf32>
    %cst = arith.constant dense<0.000000e+00> : vector<8x256xf32>
    %3 = tpu.matmul %0, %2, %cst {dimension_numbers = #tpu.dot_dimension_numbers<[1], [0], [0], [1], [0, 0, 1, 1], [], []>} : vector<8x8xf32>, vector<8x256xf32>, vector<8x256xf32> -> vector<8x256xf32>
    %c0_4 = arith.constant 0 : index
    %c0_5 = arith.constant 0 : index
    %c0_6 = arith.constant 0 : index
    %4 = vector.load %arg2[%c0_4, %c0_5, %c0_6] : memref<1x8x256xf32, #tpu.memory_space<vmem>>, vector<1x8x256xf32>
    %5 = vector.shape_cast %4 : vector<1x8x256xf32> to vector<8x256xf32>
    %c0_7 = arith.constant 0 : index
    %c0_8 = arith.constant 0 : index
    %c0_9 = arith.constant 0 : index
    %6 = vector.load %arg3[%c0_7, %c0_8, %c0_9] : memref<1x8x256xf32, #tpu.memory_space<vmem>>, vector<1x8x256xf32>
    %7 = vector.shape_cast %6 : vector<1x8x256xf32> to vector<8x256xf32>
    %8 = arith.addf %5, %7 : vector<8x256xf32>
    %c0_10 = arith.constant 0 : index
    %c0_11 = arith.constant 0 : index
    %9 = vector.load %arg5[%c0_10, %c0_11] : memref<8x8xf32, #tpu.memory_space<vmem>>, vector<8x8xf32>
    %cst_12 = arith.constant dense<0.000000e+00> : vector<8x256xf32>
    %10 = tpu.matmul %9, %8, %cst_12 {dimension_numbers = #tpu.dot_dimension_numbers<[1], [0], [0], [1], [0, 0, 1, 1], [], []>} : vector<8x8xf32>, vector<8x256xf32>, vector<8x256xf32> -> vector<8x256xf32>
    %11 = arith.addf %3, %10 : vector<8x256xf32>
    %c0_13 = arith.constant 0 : index
    %c0_14 = arith.constant 0 : index
    %12 = vector.load %arg6[%c0_13, %c0_14] : memref<8x1xf32, #tpu.memory_space<vmem>>, vector<8x1xf32>
    %13 = vector.broadcast %12 : vector<8x1xf32> to vector<8x256xf32>
    %14 = arith.addf %11, %13 : vector<8x256xf32>
    %c0_15 = arith.constant 0 : index
    %c0_16 = arith.constant 0 : index
    %c0_17 = arith.constant 0 : index
    %15 = vector.load %arg7[%c0_15, %c0_16, %c0_17] : memref<1x8x256xf32, #tpu.memory_space<vmem>>, vector<1x8x256xf32>
    %16 = vector.shape_cast %15 : vector<1x8x256xf32> to vector<8x256xf32>
    %17 = vector.shape_cast %14 : vector<8x256xf32> to vector<1x8x256xf32>
    tpu.vector_store %arg7[%c0_15, %c0_16, %c0_17], %17 {strides = array<i32>} : memref<1x8x256xf32, #tpu.memory_space<vmem>>, vector<1x8x256xf32>,
    return
  }
  func.func @transform_0(%arg0: i32) -> (i32, i32, i32) {
    %c0_i32 = arith.constant 0 : i32
    %c0_i32_0 = arith.constant 0 : i32
    %c0_i32_1 = arith.constant 0 : i32
    return %arg0, %c0_i32, %c0_i32_0 : i32, i32, i32
  }
  func.func @transform_1(%arg0: i32) -> (i32, i32, i32) {
    %c0_i32 = arith.constant 0 : i32
    %c0_i32_0 = arith.constant 0 : i32
    %c0_i32_1 = arith.constant 0 : i32
    return %arg0, %c0_i32, %c0_i32_0 : i32, i32, i32
  }
  func.func @transform_2(%arg0: i32) -> (i32, i32, i32) {
    %c0_i32 = arith.constant 0 : i32
    %c0_i32_0 = arith.constant 0 : i32
    %c0_i32_1 = arith.constant 0 : i32
    return %arg0, %c0_i32, %c0_i32_0 : i32, i32, i32
  }
  func.func @transform_3(%arg0: i32) -> (i32, i32) {
    %c0_i32 = arith.constant 0 : i32
    %c0_i32_0 = arith.constant 0 : i32
    %c0_i32_1 = arith.constant 0 : i32
    return %c0_i32, %c0_i32_0 : i32, i32
  }
  func.func @transform_4(%arg0: i32) -> (i32, i32) {
    %c0_i32 = arith.constant 0 : i32
    %c0_i32_0 = arith.constant 0 : i32
    %c0_i32_1 = arith.constant 0 : i32
    return %c0_i32, %c0_i32_0 : i32, i32
  }
  func.func @transform_5(%arg0: i32) -> (i32, i32) {
    %c0_i32 = arith.constant 0 : i32
    %c0_i32_0 = arith.constant 0 : i32
    %c0_i32_1 = arith.constant 0 : i32
    return %c0_i32, %c0_i32_0 : i32, i32
  }
  func.func @transform_6(%arg0: i32) -> (i32, i32, i32) {
    %c0_i32 = arith.constant 0 : i32
    %c0_i32_0 = arith.constant 0 : i32
    %c0_i32_1 = arith.constant 0 : i32
    return %arg0, %c0_i32, %c0_i32_0 : i32, i32, i32
  }
}

</mosaic_0001>

<llo_original>
// kernel: sfb_forward.3
$region0: #{sfb_forward.3}
  #allocation0 [shape = 'u32[]', space=smem, size = 0x4, offset = 0x4, fixed_abs, tag = 'smem constant byte address 0x4 - core index']
  #allocation1 [shape = 'u32[72,128]{1,0:T(1,128)}', space=vmem, size = 0x9000, scoped, tag = 'internal scratch']
  #allocation2 [shape = 'f32[8,384]{1,0:T(8,128)}', space=vmem, size = 0x3000, scoped, tag = 'scratch operand']
  %s0 = inlined_call_operand.vmem [shape: f32[2,8,384], index: 0, kind: input, shape index: {}]
  %s1 = inlined_call_operand.vmem [shape: f32[16,72], index: 1, kind: input, shape index: {}]
  %s2 = inlined_call_operand.vmem [shape: f32[16,1], index: 2, kind: input, shape index: {}]
  %s3 = inlined_call_operand.vmem [shape: f32[8,72], index: 3, kind: input, shape index: {}]
  %s4 = inlined_call_operand.vmem [shape: f32[8,1], index: 4, kind: input, shape index: {}]
  %s5 = inlined_call_operand.vmem [shape: f32[1,288], index: 5, kind: input, shape index: {}]
  %s6 = inlined_call_operand.vmem [shape: f32[2,8,288], index: 6, kind: output, shape index: {0}]
  %s7 = inlined_call_operand.vmem [shape: f32[2,8,288], index: 7, kind: output, shape index: {1}]
  %8 = xla_tuple %s6, %s7
  %s9 = sld [smem:[#allocation0]]
  $region65: #{sfb_forward.3} parent=0
    _
  %s11 = ssub.s32 1, %s9
  %s12 = scalar_select 0, %s11, %s9
  loop: start=0, step=1, limit=4
  $region2: #{sfb_forward.3} parent=0 // loop_pre_header
    _
  $region3: #{sfb_forward.3} parent=0 // loop_header
    %s14 = sphi 0, %s18
    %p15 = scmp.ge.s32.totalorder %s14, 4
    %s24 = sphi 0, %s26
    %s27 = sphi 0, %s24
    %s28 = sphi 0, %s27
    %s44 = sphi 0, %s28
    %s48 = sphi 0, %s48
    %s50 = sphi 0, %s48
    %s51 = sphi 0, %s50
    %s65 = sphi 0, %s51
    %s69 = sphi 0, %s69
    %s71 = sphi 0, %s69
    %s72 = sphi 0, %s71
    %s86 = sphi 0, %s72
    %s90 = sphi 0, %s90
    %s92 = sphi 0, %s90
    %s93 = sphi 0, %s92
    %s107 = sphi 0, %s93
    %s111 = sphi 0, %s111
    %s113 = sphi 0, %s111
    %s114 = sphi 0, %s113
    %s128 = sphi 0, %s114
    %s132 = sphi 0, %s132
    %s134 = sphi 0, %s132
    %s135 = sphi 0, %s134
    %s149 = sphi 0, %s135
    %s155 = sphi 0, %s157
    %s158 = sphi 0, %s155
    %s159 = sphi 0, %s158
    %s175 = sphi 0, %s159
    %s181 = sphi 0, %s183
    %s184 = sphi 0, %s181
    %s185 = sphi 0, %s184
    %s201 = sphi 0, %s185
  $region4: #{sfb_forward.3} parent=0 // loop_header_branch
    %17 = sbr.rel (%p15) target = $region8
  $region5: #{sfb_forward.3} parent=0 // loop_body
    %s19 = ssub.s32 %s14, 1
    %s20 = ssub.s32 %s14, 2
    %s21 = sadd.s32 %s14, 1
    %s22 = ssub.s32 %s14, %s21
    %p23 = scmp.eq.s32.totalorder %s22, 0
    %s25 = sadd.s32 %s24, 1
    %s26 = scalar_select %p23, %s24, %s25
    %p29 = pneg %p23
    %p30 = scmp.eq.s32.totalorder %s14, 1
    %p31 = por %p29, %p30
    %p32 = scmp.ne.s32.totalorder %s24, %s27
    %p33 = scmp.eq.s32.totalorder %s14, 0
    %p34 = por %p32, %p33
    %p35 = scmp.ne.s32.totalorder %s24, %s27
    %p36 = scmp.eq.s32.totalorder %s19, 1
    %p37 = por %p35, %p36
    %p38 = scmp.ne.s32.totalorder %s27, %s28
    %p39 = scmp.eq.s32.totalorder %s19, 0
    %p40 = por %p38, %p39
    %p41 = scmp.ne.s32.totalorder %s27, %s28
    %p42 = scmp.eq.s32.totalorder %s20, 1
    %p43 = por %p41, %p42
    %p45 = scmp.ne.s32.totalorder %s28, %s44
    %p46 = scmp.eq.s32.totalorder %s20, 0
    %p47 = por %p45, %p46
    %s49 = sadd.s32 %s48, 1
    %p52 = scmp.eq.s32.totalorder %s14, 1
    %p53 = scmp.ne.s32.totalorder %s48, %s50
    %p54 = scmp.eq.s32.totalorder %s14, 0
    %p55 = por %p53, %p54
    %p56 = scmp.ne.s32.totalorder %s48, %s50
    %p57 = scmp.eq.s32.totalorder %s19, 1
    %p58 = por %p56, %p57
    %p59 = scmp.ne.s32.totalorder %s50, %s51
    %p60 = scmp.eq.s32.totalorder %s19, 0
    %p61 = por %p59, %p60
    %p62 = scmp.ne.s32.totalorder %s50, %s51
    %p63 = scmp.eq.s32.totalorder %s20, 1
    %p64 = por %p62, %p63
    %p66 = scmp.ne.s32.totalorder %s51, %s65
    %p67 = scmp.eq.s32.totalorder %s20, 0
    %p68 = por %p66, %p67
    %s70 = sadd.s32 %s69, 1
    %p73 = scmp.eq.s32.totalorder %s14, 1
    %p74 = scmp.ne.s32.totalorder %s69, %s71
    %p75 = scmp.eq.s32.totalorder %s14, 0
    %p76 = por %p74, %p75
    %p77 = scmp.ne.s32.totalorder %s69, %s71
    %p78 = scmp.eq.s32.totalorder %s19, 1
    %p79 = por %p77, %p78
    %p80 = scmp.ne.s32.totalorder %s71, %s72
    %p81 = scmp.eq.s32.totalorder %s19, 0
    %p82 = por %p80, %p81
    %p83 = scmp.ne.s32.totalorder %s71, %s72
    %p84 = scmp.eq.s32.totalorder %s20, 1
    %p85 = por %p83, %p84
    %p87 = scmp.ne.s32.totalorder %s72, %s86
    %p88 = scmp.eq.s32.totalorder %s20, 0
    %p89 = por %p87, %p88
    %s91 = sadd.s32 %s90, 1
    %p94 = scmp.eq.s32.totalorder %s14, 1
    %p95 = scmp.ne.s32.totalorder %s90, %s92
    %p96 = scmp.eq.s32.totalorder %s14, 0
    %p97 = por %p95, %p96
    %p98 = scmp.ne.s32.totalorder %s90, %s92
    %p99 = scmp.eq.s32.totalorder %s19, 1
    %p100 = por %p98, %p99
    %p101 = scmp.ne.s32.totalorder %s92, %s93
    %p102 = scmp.eq.s32.totalorder %s19, 0
    %p103 = por %p101, %p102
    %p104 = scmp.ne.s32.totalorder %s92, %s93
    %p105 = scmp.eq.s32.totalorder %s20, 1
    %p106 = por %p104, %p105
    %p108 = scmp.ne.s32.totalorder %s93, %s107
    %p109 = scmp.eq.s32.totalorder %s20, 0
    %p110 = por %p108, %p109
    %s112 = sadd.s32 %s111, 1
    %p115 = scmp.eq.s32.totalorder %s14, 1
    %p116 = scmp.ne.s32.totalorder %s111, %s113
    %p117 = scmp.eq.s32.totalorder %s14, 0
    %p118 = por %p116, %p117
    %p119 = scmp.ne.s32.totalorder %s111, %s113
    %p120 = scmp.eq.s32.totalorder %s19, 1
    %p121 = por %p119, %p120
    %p122 = scmp.ne.s32.totalorder %s113, %s114
    %p123 = scmp.eq.s32.totalorder %s19, 0
    %p124 = por %p122, %p123
    %p125 = scmp.ne.s32.totalorder %s113, %s114
    %p126 = scmp.eq.s32.totalorder %s20, 1
    %p127 = por %p125, %p126
    %p129 = scmp.ne.s32.totalorder %s114, %s128
    %p130 = scmp.eq.s32.totalorder %s20, 0
    %p131 = por %p129, %p130
    %s133 = sadd.s32 %s132, 1
    %p136 = scmp.eq.s32.totalorder %s14, 1
    %p137 = scmp.ne.s32.totalorder %s132, %s134
    %p138 = scmp.eq.s32.totalorder %s14, 0
    %p139 = por %p137, %p138
    %p140 = scmp.ne.s32.totalorder %s132, %s134
    %p141 = scmp.eq.s32.totalorder %s19, 1
    %p142 = por %p140, %p141
    %p143 = scmp.ne.s32.totalorder %s134, %s135
    %p144 = scmp.eq.s32.totalorder %s19, 0
    %p145 = por %p143, %p144
    %p146 = scmp.ne.s32.totalorder %s134, %s135
    %p147 = scmp.eq.s32.totalorder %s20, 1
    %p148 = por %p146, %p147
    %p150 = scmp.ne.s32.totalorder %s135, %s149
    %p151 = scmp.eq.s32.totalorder %s20, 0
    %p152 = por %p150, %p151
    %s153 = ssub.s32 %s14, %s21
    %p154 = scmp.eq.s32.totalorder %s153, 0
    %s156 = sadd.s32 %s155, 1
    %s157 = scalar_select %p154, %s155, %s156
    %p160 = pneg %p154
    %p161 = scmp.eq.s32.totalorder %s14, 1
    %p162 = por %p160, %p161
    %p163 = scmp.ne.s32.totalorder %s155, %s158
    %p164 = scmp.eq.s32.totalorder %s14, 0
    %p165 = por %p163, %p164
    %p166 = scmp.ne.s32.totalorder %s155, %s158
    %p167 = scmp.eq.s32.totalorder %s19, 1
    %p168 = por %p166, %p167
    %p169 = scmp.ne.s32.totalorder %s158, %s159
    %p170 = scmp.eq.s32.totalorder %s19, 0
    %p171 = por %p169, %p170
    %p172 = scmp.ne.s32.totalorder %s158, %s159
    %p173 = scmp.eq.s32.totalorder %s20, 1
    %p174 = por %p172, %p173
    %p176 = scmp.ne.s32.totalorder %s159, %s175
    %p177 = scmp.eq.s32.totalorder %s20, 0
    %p178 = por %p176, %p177
    %s179 = ssub.s32 %s14, %s21
    %p180 = scmp.eq.s32.totalorder %s179, 0
    %s182 = sadd.s32 %s181, 1
    %s183 = scalar_select %p180, %s181, %s182
    %p186 = pneg %p180
    %p187 = scmp.eq.s32.totalorder %s14, 1
    %p188 = por %p186, %p187
    %p189 = scmp.ne.s32.totalorder %s181, %s184
    %p190 = scmp.eq.s32.totalorder %s14, 0
    %p191 = por %p189, %p190
    %p192 = scmp.ne.s32.totalorder %s181, %s184
    %p193 = scmp.eq.s32.totalorder %s19, 1
    %p194 = por %p192, %p193
    %p195 = scmp.ne.s32.totalorder %s184, %s185
    %p196 = scmp.eq.s32.totalorder %s19, 0
    %p197 = por %p195, %p196
    %p198 = scmp.ne.s32.totalorder %s184, %s185
    %p199 = scmp.eq.s32.totalorder %s20, 1
    %p200 = por %p198, %p199
    %p202 = scmp.ne.s32.totalorder %s185, %s201
    %p203 = scmp.eq.s32.totalorder %s20, 0
    %p204 = por %p202, %p203
    %p205 = scmp.le.s32.totalorder 1, %s14
    %p206 = scmp.lt.s32.totalorder %s14, 3
    %p207 = pnand %p205, %p206
    %p208 = pneg %p207
    // Predicated region
    $region9: #{sfb_forward.3} parent=5 // pred_check
      _
    $region10: #{sfb_forward.3} parent=5 // pred_check_branch
      %210 = sbr.rel (%p207) target = $region12
    $region11: #{sfb_forward.3} parent=5 // pred_region
      %s211 = ssub.s32 %s14, 1
      // Predicated region
      $region13: #{sfb_forward.3} parent=11 // pred_check
        %p212 = pneg %p61
      $region14: #{sfb_forward.3} parent=11 // pred_check_branch
        %214 = sbr.rel (%p212) target = $region16
      $region15: #{sfb_forward.3} parent=11 // pred_region
        _
      $region16: #{sfb_forward.3} parent=11 // pred_fallthru
        _
      // Predicated region
      $region17: #{sfb_forward.3} parent=11 // pred_check
        %p215 = pneg %p82
      $region18: #{sfb_forward.3} parent=11 // pred_check_branch
        %217 = sbr.rel (%p215) target = $region20
      $region19: #{sfb_forward.3} parent=11 // pred_region
        _
      $region20: #{sfb_forward.3} parent=11 // pred_fallthru
        _
      // Predicated region
      $region21: #{sfb_forward.3} parent=11 // pred_check
        %p218 = pneg %p103
      $region22: #{sfb_forward.3} parent=11 // pred_check_branch
        %220 = sbr.rel (%p218) target = $region24
      $region23: #{sfb_forward.3} parent=11 // pred_region
        _
      $region24: #{sfb_forward.3} parent=11 // pred_fallthru
        _
      // Predicated region
      $region25: #{sfb_forward.3} parent=11 // pred_check
        %p221 = pneg %p124
      $region26: #{sfb_forward.3} parent=11 // pred_check_branch
        %223 = sbr.rel (%p221) target = $region28
      $region27: #{sfb_forward.3} parent=11 // pred_region
        _
      $region28: #{sfb_forward.3} parent=11 // pred_fallthru
        _
      // Predicated region
      $region29: #{sfb_forward.3} parent=11 // pred_check
        %p224 = pneg %p145
      $region30: #{sfb_forward.3} parent=11 // pred_check_branch
        %226 = sbr.rel (%p224) target = $region32
      $region31: #{sfb_forward.3} parent=11 // pred_region
        _
      $region32: #{sfb_forward.3} parent=11 // pred_fallthru
        _
    $region12: #{sfb_forward.3} parent=5 // pred_fallthru
      _
    %p227 = scmp.lt.s32.totalorder %s14, 2
    // Predicated region
    $region33: #{sfb_forward.3} parent=5 // pred_check
      %p228 = pneg %p227
    $region34: #{sfb_forward.3} parent=5 // pred_check_branch
      %230 = sbr.rel (%p228) target = $region36
    $region35: #{sfb_forward.3} parent=5 // pred_region
      // Predicated region
      $region37: #{sfb_forward.3} parent=35 // pred_check
        %p231 = pneg %p34
      $region38: #{sfb_forward.3} parent=35 // pred_check_branch
        %233 = sbr.rel (%p231) target = $region40
      $region39: #{sfb_forward.3} parent=35 // pred_region
        %p234 = scmp.lt.s32.totalorder %s14, 1
        %s235 = scalar_select %p234, %s14, 1
        %s236 = smul.addr %s235, 3
        %s237 = smul.addr %s236, 8
        %s238 = scalar_lea.vmem %s0, %s237
      $region40: #{sfb_forward.3} parent=35 // pred_fallthru
        _
    $region36: #{sfb_forward.3} parent=5 // pred_fallthru
      _
    %p239 = scmp.le.s32.totalorder 1, %s14
    %p240 = scmp.lt.s32.totalorder %s14, 3
    %p241 = pnand %p239, %p240
    %p242 = pneg %p241
    // Predicated region
    $region41: #{sfb_forward.3} parent=5 // pred_check
      _
    $region42: #{sfb_forward.3} parent=5 // pred_check_branch
      %244 = sbr.rel (%p241) target = $region44
    $region43: #{sfb_forward.3} parent=5 // pred_region
      %s245 = ssub.s32 %s14, 1
      %p246 = scmp.lt.s32.totalorder %s19, 1
      %s247 = scalar_select %p246, %s19, 1
      %s248 = smul.addr %s247, 3
      %s249 = smul.addr %s248, 8
      %s250 = scalar_lea.vmem %s0, %s249
      %p251 = pneg %p40
      %p252 = pneg %p37
      %p253 = pneg %p61
      %p254 = pneg %p58
      %p255 = pneg %p82
      %p256 = pneg %p79
      %p257 = pneg %p103
      %p258 = pneg %p100
      %p259 = pneg %p124
      %p260 = pneg %p121
      %p261 = pneg %p145
      %p262 = pneg %p142
      %p263 = pneg %p171
      %p264 = pneg %p168
      %p265 = scmp.lt.s32.totalorder %s19, 1
      %s266 = scalar_select %p265, %s19, 1
      %s267 = smul.addr %s266, 3
      %s268 = smul.addr %s267, 8
      %s269 = scalar_lea.vmem %s6, %s268
      %p270 = pneg %p197
      %p271 = pneg %p194
      %p272 = scmp.lt.s32.totalorder %s19, 1
      %s273 = scalar_select %p272, %s19, 1
      %s274 = smul.addr %s273, 3
      %s275 = smul.addr %s274, 8
      %s276 = scalar_lea.vmem %s7, %s275
      %p277 = scmp.lt.s32.totalorder %s19, 1
      %s278 = scalar_select %p277, %s19, 1
      %s279 = smul.addr %s278, 3
      %s280 = smul.addr %s279, 8
      %s281 = scalar_lea.vmem %s0, %s280
      %p282 = scmp.lt.s32.totalorder %s19, 1
      %s283 = scalar_select %p282, %s19, 1
      %s284 = smul.addr %s283, 3
      %s285 = smul.addr %s284, 8
      %s286 = scalar_lea.vmem %s6, %s285
      %p287 = scmp.lt.s32.totalorder %s19, 1
      %s288 = scalar_select %p287, %s19, 1
      %s289 = smul.addr %s288, 3
      %s290 = smul.addr %s289, 8
      %s291 = scalar_lea.vmem %s7, %s290
      %v292 = vld [vmem:[%s281] sm:$0xff]
      %v293 = vld [vmem:[%s281 + $0x8] sm:$0xff]
      %v294 = vld [vmem:[%s281 + $0x10] sm:$0xff]
      %298 = vrot.lane.b32.xlu0 %v292, 127
      %v299 = vpop.permute.xlu0 %298
      %300 = vrot.lane.b32.xlu0 %v293, 127
      %v301 = vpop.permute.xlu0 %300
      %302 = vrot.lane.b32.xlu0 %v294, 127
      %v303 = vpop.permute.xlu0 %302
      %vm304 = vcmask 1039360
      %v305 = vsel %vm304, %v299, %v301
      %v306 = vsel %vm304, %v301, %v303
      %310 = vrot.lane.b32.xlu0 %v292, 126
      %v311 = vpop.permute.xlu0 %310
      %312 = vrot.lane.b32.xlu0 %v293, 126
      %v313 = vpop.permute.xlu0 %312
      %314 = vrot.lane.b32.xlu0 %v294, 126
      %v315 = vpop.permute.xlu0 %314
      %vm316 = vcmask 1031168
      %v317 = vsel %vm316, %v311, %v313
      %v318 = vsel %vm316, %v313, %v315
      %322 = vrot.lane.b32.xlu0 %v292, 110
      %v323 = vpop.permute.xlu0 %322
      %324 = vrot.lane.b32.xlu0 %v293, 110
      %v325 = vpop.permute.xlu0 %324
      %326 = vrot.lane.b32.xlu0 %v294, 110
      %v327 = vpop.permute.xlu0 %326
      %vm328 = vcmask 900096
      %v329 = vsel %vm328, %v323, %v325
      %v330 = vsel %vm328, %v325, %v327
      %334 = vrot.lane.b32.xlu0 %v292, 109
      %v335 = vpop.permute.xlu0 %334
      %336 = vrot.lane.b32.xlu0 %v293, 109
      %v337 = vpop.permute.xlu0 %336
      %338 = vrot.lane.b32.xlu0 %v294, 109
      %v339 = vpop.permute.xlu0 %338
      %vm340 = vcmask 891904
      %v341 = vsel %vm340, %v335, %v337
      %v342 = vsel %vm340, %v337, %v339
      %346 = vrot.lane.b32.xlu0 %v292, 108
      %v347 = vpop.permute.xlu0 %346
      %348 = vrot.lane.b32.xlu0 %v293, 108
      %v349 = vpop.permute.xlu0 %348
      %350 = vrot.lane.b32.xlu0 %v294, 108
      %v351 = vpop.permute.xlu0 %350
      %vm352 = vcmask 883712
      %v353 = vsel %vm352, %v347, %v349
      %v354 = vsel %vm352, %v349, %v351
      %358 = vrot.lane.b32.xlu0 %v292, 92
      %v359 = vpop.permute.xlu0 %358
      %360 = vrot.lane.b32.xlu0 %v293, 92
      %v361 = vpop.permute.xlu0 %360
      %362 = vrot.lane.b32.xlu0 %v294, 92
      %v363 = vpop.permute.xlu0 %362
      %vm364 = vcmask 752640
      %v365 = vsel %vm364, %v359, %v361
      %v366 = vsel %vm364, %v361, %v363
      %370 = vrot.lane.b32.xlu0 %v292, 91
      %v371 = vpop.permute.xlu0 %370
      %372 = vrot.lane.b32.xlu0 %v293, 91
      %v373 = vpop.permute.xlu0 %372
      %374 = vrot.lane.b32.xlu0 %v294, 91
      %v375 = vpop.permute.xlu0 %374
      %vm376 = vcmask 744448
      %v377 = vsel %vm376, %v371, %v373
      %v378 = vsel %vm376, %v373, %v375
      %382 = vrot.lane.b32.xlu0 %v292, 90
      %v383 = vpop.permute.xlu0 %382
      %384 = vrot.lane.b32.xlu0 %v293, 90
      %v385 = vpop.permute.xlu0 %384
      %386 = vrot.lane.b32.xlu0 %v294, 90
      %v387 = vpop.permute.xlu0 %386
      %vm388 = vcmask 736256
      %v389 = vsel %vm388, %v383, %v385
      %v390 = vsel %vm388, %v385, %v387
      %v394 = vld [vmem:[%s1] sm:$0xff]
      %v395 = vld [vmem:[%s1 + $0x8] sm:$0xff]
      %v396 = vld [vmem:[%s2] sm:$0xff]
      %v397 = vld [vmem:[%s2 + $0x8] sm:$0xff]
      %399 = vset.pattern.permute.xlu0 0
      %400 = vperm.xlu0 %399, %v396
      %v401 = vpop.permute.xlu0 %400
      %404 = vset.pattern.permute.xlu0 0
      %405 = vperm.xlu0 %404, %v397
      %v406 = vpop.permute.xlu0 %405
      %vm408 = vcmask 588800
      %v410 = vsel %vm408, %v394, 0
      %v413 = vsel %vm408, %v395, 0
      %415 = vmatpush.msra.mxu0 0.0
      %416 = vmatpush.msra.mxu0 0.0
      %417 = vmatpush.msra.mxu0 0.0
      %418 = vmatpush.msra.mxu0 0.0
      %419 = vmatpush.msra.mxu0 0.0
      %420 = vmatpush.msra.mxu0 0.0
      %421 = vmatpush.msra.mxu0 0.0
      %422 = vmatpush.msra.mxu0 %v389
      %423 = vmatpush.msra.mxu0 %v377
      %424 = vmatpush.msra.mxu0 %v365
      %425 = vmatpush.msra.mxu0 %v353
      %426 = vmatpush.msra.mxu0 %v341
      %427 = vmatpush.msra.mxu0 %v329
      %428 = vmatpush.msra.mxu0 %v317
      %429 = vmatpush.msra.mxu0 %v305
      %430 = vmatpush.msra.mxu0 %v292
      %431 = vmatmul.f32.gmra.mxu0 %v410
      %v432 = vpop.f32.mrf.mxu0
      %v433 = vadd.f32 %v401, %v432
      %434 = vmatmul.f32.gmra.mxu0 %v413
      %v435 = vpop.f32.mrf.mxu0
      %v436 = vadd.f32 %v406, %v435
      %437 = vdwg.mxu0
      %438 = vmatpush.msra.mxu0 0.0
      %439 = vmatpush.msra.mxu0 0.0
      %440 = vmatpush.msra.mxu0 0.0
      %441 = vmatpush.msra.mxu0 0.0
      %442 = vmatpush.msra.mxu0 0.0
      %443 = vmatpush.msra.mxu0 0.0
      %444 = vmatpush.msra.mxu0 0.0
      %445 = vmatpush.msra.mxu0 %v390
      %446 = vmatpush.msra.mxu0 %v378
      %447 = vmatpush.msra.mxu0 %v366
      %448 = vmatpush.msra.mxu0 %v354
      %449 = vmatpush.msra.mxu0 %v342
      %450 = vmatpush.msra.mxu0 %v330
      %451 = vmatpush.msra.mxu0 %v318
      %452 = vmatpush.msra.mxu0 %v306
      %453 = vmatpush.msra.mxu0 %v293
      %454 = vmatmul.f32.gmra.mxu0 %v410
      %v455 = vpop.f32.mrf.mxu0
      %v456 = vadd.f32 %v401, %v455
      %457 = vmatmul.f32.gmra.mxu0 %v413
      %v458 = vpop.f32.mrf.mxu0
      %v459 = vadd.f32 %v406, %v458
      %460 = vdwg.mxu0
      %461 = vmatpush.msra.mxu0 0.0
      %462 = vmatpush.msra.mxu0 0.0
      %463 = vmatpush.msra.mxu0 0.0
      %464 = vmatpush.msra.mxu0 0.0
      %465 = vmatpush.msra.mxu0 0.0
      %466 = vmatpush.msra.mxu0 0.0
      %467 = vmatpush.msra.mxu0 0.0
      %468 = vmatpush.msra.mxu0 %v387
      %469 = vmatpush.msra.mxu0 %v375
      %470 = vmatpush.msra.mxu0 %v363
      %471 = vmatpush.msra.mxu0 %v351
      %472 = vmatpush.msra.mxu0 %v339
      %473 = vmatpush.msra.mxu0 %v327
      %474 = vmatpush.msra.mxu0 %v315
      %475 = vmatpush.msra.mxu0 %v303
      %476 = vmatpush.msra.mxu0 %v294
      %477 = vmatmul.f32.gmra.mxu0 %v410
      %v478 = vpop.f32.mrf.mxu0
      %v479 = vadd.f32 %v401, %v478
      %480 = vmatmul.f32.gmra.mxu0 %v413
      %v481 = vpop.f32.mrf.mxu0
      %v482 = vadd.f32 %v406, %v481
      %483 = vdwg.mxu0
      %vm484 = vcmp.ge.f32.partialorder %v433, 0.0
      %vm485 = vcmp.ge.f32.partialorder %v456, 0.0
      %vm486 = vcmp.ge.f32.partialorder %v479, 0.0
      %vm487 = vcmp.ge.f32.partialorder %v436, 0.0
      %vm488 = vcmp.ge.f32.partialorder %v459, 0.0
      %vm489 = vcmp.ge.f32.partialorder %v482, 0.0
      %v490 = vmul.f32 %v433, 0.01
      %v491 = vmul.f32 %v456, 0.01
      %v492 = vmul.f32 %v479, 0.01
      %v493 = vmul.f32 %v436, 0.01
      %v494 = vmul.f32 %v459, 0.01
      %v495 = vmul.f32 %v482, 0.01
      %v496 = vsel %vm484, %v433, %v490
      %v497 = vsel %vm485, %v456, %v491
      %v498 = vsel %vm486, %v479, %v492
      %v499 = vsel %vm487, %v436, %v493
      %v500 = vsel %vm488, %v459, %v494
      %v501 = vsel %vm489, %v482, %v495
      %v502 = vld [vmem:[%s5] sm:$0x7]
      %v504 = vperm.slane %v502, 0
      %v505 = vperm.slane %v502, 1
      %v506 = vperm.slane %v502, 2
      %v510 = vmul.f32 %v496, %v504
      %v511 = vmul.f32 %v497, %v505
      %v512 = vmul.f32 %v498, %v506
      %513 = vst [vmem:[%s291] sm:$0xff] %v499
      %514 = vst [vmem:[%s291 + $0x8] sm:$0xff] %v500
      %vm515 = vcmask 261120
      %516 = vst.msk [vmem:[%s291 + $0x10] sm:$0xff] %vm515, %v501
      %517 = vst [vmem:[#allocation2] sm:$0xff] 0.0
      %518 = vst [vmem:[#allocation2 + $0x8] sm:$0xff] 0.0
      %519 = vst [vmem:[#allocation2 + $0x10] sm:$0xff] 0.0
      %523 = vrot.lane.b32.xlu0 %v510, 19
      %v524 = vpop.permute.xlu0 %523
      %525 = vrot.lane.b32.xlu0 %v511, 19
      %v526 = vpop.permute.xlu0 %525
      %527 = vrot.lane.b32.xlu0 %v512, 19
      %v528 = vpop.permute.xlu0 %527
      %vm529 = vcmask 154624
      %v530 = vsel %vm529, %v524, %v526
      %v531 = vsel %vm529, %v526, %v528
      %vm535 = vcmask 1047704
      %536 = vst.msk [vmem:[#allocation2] sm:$0xff] %vm535, %v524
      %537 = vst [vmem:[#allocation2 + $0x8] sm:$0xff] %v530
      %vm538 = vcmask 416768
      %539 = vst.msk [vmem:[#allocation2 + $0x10] sm:$0xff] %vm538, %v531
      %v540 = vld [vmem:[#allocation2] sm:$0xff]
      %v541 = vld [vmem:[#allocation2 + $0x8] sm:$0xff]
      %v542 = vld [vmem:[#allocation2 + $0x10] sm:$0xff]
      %546 = vrot.lane.b32.xlu0 %v540, 127
      %v547 = vpop.permute.xlu0 %546
      %548 = vrot.lane.b32.xlu0 %v541, 127
      %v549 = vpop.permute.xlu0 %548
      %550 = vrot.lane.b32.xlu0 %v542, 127
      %v551 = vpop.permute.xlu0 %550
      %v552 = vsel %vm304, %v547, %v549
      %v553 = vsel %vm304, %v549, %v551
      %557 = vrot.lane.b32.xlu0 %v540, 126
      %v558 = vpop.permute.xlu0 %557
      %559 = vrot.lane.b32.xlu0 %v541, 126
      %v560 = vpop.permute.xlu0 %559
      %561 = vrot.lane.b32.xlu0 %v542, 126
      %v562 = vpop.permute.xlu0 %561
      %v563 = vsel %vm316, %v558, %v560
      %v564 = vsel %vm316, %v560, %v562
      %568 = vrot.lane.b32.xlu0 %v540, 110
      %v569 = vpop.permute.xlu0 %568
      %570 = vrot.lane.b32.xlu0 %v541, 110
      %v571 = vpop.permute.xlu0 %570
      %572 = vrot.lane.b32.xlu0 %v542, 110
      %v573 = vpop.permute.xlu0 %572
      %v574 = vsel %vm328, %v569, %v571
      %v575 = vsel %vm328, %v571, %v573
      %579 = vrot.lane.b32.xlu0 %v540, 109
      %v580 = vpop.permute.xlu0 %579
      %581 = vrot.lane.b32.xlu0 %v541, 109
      %v582 = vpop.permute.xlu0 %581
      %583 = vrot.lane.b32.xlu0 %v542, 109
      %v584 = vpop.permute.xlu0 %583
      %v585 = vsel %vm340, %v580, %v582
      %v586 = vsel %vm340, %v582, %v584
      %590 = vrot.lane.b32.xlu0 %v540, 108
      %v591 = vpop.permute.xlu0 %590
      %592 = vrot.lane.b32.xlu0 %v541, 108
      %v593 = vpop.permute.xlu0 %592
      %594 = vrot.lane.b32.xlu0 %v542, 108
      %v595 = vpop.permute.xlu0 %594
      %v596 = vsel %vm352, %v591, %v593
      %v597 = vsel %vm352, %v593, %v595
      %601 = vrot.lane.b32.xlu0 %v540, 92
      %v602 = vpop.permute.xlu0 %601
      %603 = vrot.lane.b32.xlu0 %v541, 92
      %v604 = vpop.permute.xlu0 %603
      %605 = vrot.lane.b32.xlu0 %v542, 92
      %v606 = vpop.permute.xlu0 %605
      %v607 = vsel %vm364, %v602, %v604
      %v608 = vsel %vm364, %v604, %v606
      %612 = vrot.lane.b32.xlu0 %v540, 91
      %v613 = vpop.permute.xlu0 %612
      %614 = vrot.lane.b32.xlu0 %v541, 91
      %v615 = vpop.permute.xlu0 %614
      %616 = vrot.lane.b32.xlu0 %v542, 91
      %v617 = vpop.permute.xlu0 %616
      %v618 = vsel %vm376, %v613, %v615
      %v619 = vsel %vm376, %v615, %v617
      %623 = vrot.lane.b32.xlu0 %v540, 90
      %v624 = vpop.permute.xlu0 %623
      %625 = vrot.lane.b32.xlu0 %v541, 90
      %v626 = vpop.permute.xlu0 %625
      %627 = vrot.lane.b32.xlu0 %v542, 90
      %v628 = vpop.permute.xlu0 %627
      %v629 = vsel %vm388, %v624, %v626
      %v630 = vsel %vm388, %v626, %v628
      %v634 = vld [vmem:[%s3] sm:$0xff]
      %v635 = vld [vmem:[%s4] sm:$0xff]
      %637 = vset.pattern.permute.xlu0 0
      %638 = vperm.xlu0 %637, %v635
      %v639 = vpop.permute.xlu0 %638
      %v642 = vsel %vm408, %v634, 0
      %644 = vmatpush.msra.mxu0 0.0
      %645 = vmatpush.msra.mxu0 0.0
      %646 = vmatpush.msra.mxu0 0.0
      %647 = vmatpush.msra.mxu0 0.0
      %648 = vmatpush.msra.mxu0 0.0
      %649 = vmatpush.msra.mxu0 0.0
      %650 = vmatpush.msra.mxu0 0.0
      %651 = vmatpush.msra.mxu0 %v629
      %652 = vmatpush.msra.mxu0 %v618
      %653 = vmatpush.msra.mxu0 %v607
      %654 = vmatpush.msra.mxu0 %v596
      %655 = vmatpush.msra.mxu0 %v585
      %656 = vmatpush.msra.mxu0 %v574
      %657 = vmatpush.msra.mxu0 %v563
      %658 = vmatpush.msra.mxu0 %v552
      %659 = vmatpush.msra.mxu0 %v540
      %660 = vmatmul.f32.gmra.mxu0 %v642
      %v661 = vpop.f32.mrf.mxu0
      %v662 = vadd.f32 %v639, %v661
      %663 = vdwg.mxu0
      %664 = vmatpush.msra.mxu0 0.0
      %665 = vmatpush.msra.mxu0 0.0
      %666 = vmatpush.msra.mxu0 0.0
      %667 = vmatpush.msra.mxu0 0.0
      %668 = vmatpush.msra.mxu0 0.0
      %669 = vmatpush.msra.mxu0 0.0
      %670 = vmatpush.msra.mxu0 0.0
      %671 = vmatpush.msra.mxu0 %v630
      %672 = vmatpush.msra.mxu0 %v619
      %673 = vmatpush.msra.mxu0 %v608
      %674 = vmatpush.msra.mxu0 %v597
      %675 = vmatpush.msra.mxu0 %v586
      %676 = vmatpush.msra.mxu0 %v575
      %677 = vmatpush.msra.mxu0 %v564
      %678 = vmatpush.msra.mxu0 %v553
      %679 = vmatpush.msra.mxu0 %v541
      %680 = vmatmul.f32.gmra.mxu0 %v642
      %v681 = vpop.f32.mrf.mxu0
      %v682 = vadd.f32 %v639, %v681
      %683 = vdwg.mxu0
      %684 = vmatpush.msra.mxu0 0.0
      %685 = vmatpush.msra.mxu0 0.0
      %686 = vmatpush.msra.mxu0 0.0
      %687 = vmatpush.msra.mxu0 0.0
      %688 = vmatpush.msra.mxu0 0.0
      %689 = vmatpush.msra.mxu0 0.0
      %690 = vmatpush.msra.mxu0 0.0
      %691 = vmatpush.msra.mxu0 %v628
      %692 = vmatpush.msra.mxu0 %v617
      %693 = vmatpush.msra.mxu0 %v606
      %694 = vmatpush.msra.mxu0 %v595
      %695 = vmatpush.msra.mxu0 %v584
      %696 = vmatpush.msra.mxu0 %v573
      %697 = vmatpush.msra.mxu0 %v562
      %698 = vmatpush.msra.mxu0 %v551
      %699 = vmatpush.msra.mxu0 %v542
      %700 = vmatmul.f32.gmra.mxu0 %v642
      %v701 = vpop.f32.mrf.mxu0
      %v702 = vadd.f32 %v639, %v701
      %703 = vdwg.mxu0
      %v704 = vld [vmem:[%s281] sm:$0xff]
      %v705 = vld [vmem:[%s281 + $0x8] sm:$0xff]
      %v706 = vld [vmem:[%s281 + $0x10] sm:$0xff]
      %710 = vrot.lane.b32.xlu0 %v662, 19
      %v711 = vpop.permute.xlu0 %710
      %712 = vrot.lane.b32.xlu0 %v682, 19
      %v713 = vpop.permute.xlu0 %712
      %714 = vrot.lane.b32.xlu0 %v702, 19
      %v715 = vpop.permute.xlu0 %714
      %v716 = vsel %vm529, %v711, %v713
      %v717 = vsel %vm529, %v713, %v715
      %v721 = vadd.f32 %v704, %v711
      %v722 = vadd.f32 %v705, %v716
      %v723 = vadd.f32 %v706, %v717
      %727 = vrot.lane.b32.xlu0 %v721, 109
      %v728 = vpop.permute.xlu0 %727
      %729 = vrot.lane.b32.xlu0 %v722, 109
      %v730 = vpop.permute.xlu0 %729
      %731 = vrot.lane.b32.xlu0 %v723, 109
      %v732 = vpop.permute.xlu0 %731
      %v733 = vsel %vm340, %v728, %v730
      %v734 = vsel %vm340, %v730, %v732
      %738 = vst [vmem:[%s286] sm:$0xff] %v733
      %739 = vst [vmem:[%s286 + $0x8] sm:$0xff] %v734
      %740 = vst.msk [vmem:[%s286 + $0x10] sm:$0xff] %vm515, %v732
      %p741 = scmp.lt.s32.totalorder %s19, 1
      %s742 = scalar_select %p741, %s19, 1
      %s743 = smul.addr %s742, 3
      %s744 = smul.addr %s743, 8
      %s745 = scalar_lea.vmem %s6, %s744
      %p746 = scmp.lt.s32.totalorder %s19, 1
      %s747 = scalar_select %p746, %s19, 1
      %s748 = smul.addr %s747, 3
      %s749 = smul.addr %s748, 8
      %s750 = scalar_lea.vmem %s7, %s749
      // Predicated region
      $region45: #{sfb_forward.3} parent=43 // pred_check
        %p751 = pneg %p168
      $region46: #{sfb_forward.3} parent=43 // pred_check_branch
        %753 = sbr.rel (%p751) target = $region48
      $region47: #{sfb_forward.3} parent=43 // pred_region
        _
      $region48: #{sfb_forward.3} parent=43 // pred_fallthru
        _
      // Predicated region
      $region49: #{sfb_forward.3} parent=43 // pred_check
        %p754 = pneg %p194
      $region50: #{sfb_forward.3} parent=43 // pred_check_branch
        %756 = sbr.rel (%p754) target = $region52
      $region51: #{sfb_forward.3} parent=43 // pred_region
        _
      $region52: #{sfb_forward.3} parent=43 // pred_fallthru
        _
    $region44: #{sfb_forward.3} parent=5 // pred_fallthru
      _
    %p757 = scmp.le.s32.totalorder 2, %s14
    // Predicated region
    $region53: #{sfb_forward.3} parent=5 // pred_check
      %p758 = pneg %p757
    $region54: #{sfb_forward.3} parent=5 // pred_check_branch
      %760 = sbr.rel (%p758) target = $region56
    $region55: #{sfb_forward.3} parent=5 // pred_region
      %s761 = ssub.s32 %s14, 2
      // Predicated region
      $region57: #{sfb_forward.3} parent=55 // pred_check
        %p762 = pneg %p174
      $region58: #{sfb_forward.3} parent=55 // pred_check_branch
        %764 = sbr.rel (%p762) target = $region60
      $region59: #{sfb_forward.3} parent=55 // pred_region
        %p765 = scmp.lt.s32.totalorder %s20, 1
        %s766 = scalar_select %p765, %s20, 1
        %s767 = smul.addr %s766, 3
        %s768 = smul.addr %s767, 8
        %s769 = scalar_lea.vmem %s6, %s768
      $region60: #{sfb_forward.3} parent=55 // pred_fallthru
        _
      // Predicated region
      $region61: #{sfb_forward.3} parent=55 // pred_check
        %p770 = pneg %p200
      $region62: #{sfb_forward.3} parent=55 // pred_check_branch
        %772 = sbr.rel (%p770) target = $region64
      $region63: #{sfb_forward.3} parent=55 // pred_region
        %p773 = scmp.lt.s32.totalorder %s20, 1
        %s774 = scalar_select %p773, %s20, 1
        %s775 = smul.addr %s774, 3
        %s776 = smul.addr %s775, 8
        %s777 = scalar_lea.vmem %s7, %s776
      $region64: #{sfb_forward.3} parent=55 // pred_fallthru
        _
    $region56: #{sfb_forward.3} parent=5 // pred_fallthru
      _
  $region6: #{sfb_forward.3} parent=0 // loop_footer
    %s18 = sadd.s32 1, %s14
  $region7: #{sfb_forward.3} parent=0 // loop_footer_branch
    %13 = sbr.rel target = $region3
  $region8: #{sfb_forward.3} parent=0 // loop_exit
    _

// kernel: sfb_forward.4
$region0: #{sfb_forward.4}
  #allocation0 [shape = 'u32[]', space=smem, size = 0x4, offset = 0x4, fixed_abs, tag = 'smem constant byte address 0x4 - core index']
  #allocation1 [shape = 'u32[72,128]{1,0:T(1,128)}', space=vmem, size = 0x9000, scoped, tag = 'internal scratch']
  %s0 = inlined_call_operand.vmem [shape: f32[2,8,256], index: 0, kind: input, shape index: {}]
  %s1 = inlined_call_operand.vmem [shape: f32[2,8,256], index: 1, kind: input, shape index: {}]
  %s2 = inlined_call_operand.vmem [shape: f32[16,144], index: 2, kind: input, shape index: {}]
  %s3 = inlined_call_operand.vmem [shape: f32[16,1], index: 3, kind: input, shape index: {}]
  %s4 = inlined_call_operand.vmem [shape: f32[2,8,176], index: 4, kind: output, shape index: {0}]
  %s5 = inlined_call_operand.vmem [shape: f32[2,8,176], index: 5, kind: output, shape index: {1}]
  %6 = xla_tuple %s4, %s5
  %s7 = sld [smem:[#allocation0]]
  $region57: #{sfb_forward.4} parent=0
    _
  %s9 = ssub.s32 1, %s7
  %s10 = scalar_select 0, %s9, %s7
  loop: start=0, step=1, limit=4
  $region2: #{sfb_forward.4} parent=0 // loop_pre_header
    _
  $region3: #{sfb_forward.4} parent=0 // loop_header
    %s12 = sphi 0, %s16
    %p13 = scmp.ge.s32.totalorder %s12, 4
    %s22 = sphi 0, %s24
    %s25 = sphi 0, %s22
    %s26 = sphi 0, %s25
    %s42 = sphi 0, %s26
    %s48 = sphi 0, %s50
    %s51 = sphi 0, %s48
    %s52 = sphi 0, %s51
    %s68 = sphi 0, %s52
    %s72 = sphi 0, %s72
    %s74 = sphi 0, %s72
    %s75 = sphi 0, %s74
    %s89 = sphi 0, %s75
    %s93 = sphi 0, %s93
    %s95 = sphi 0, %s93
    %s96 = sphi 0, %s95
    %s110 = sphi 0, %s96
    %s116 = sphi 0, %s118
    %s119 = sphi 0, %s116
    %s120 = sphi 0, %s119
    %s136 = sphi 0, %s120
    %s142 = sphi 0, %s144
    %s145 = sphi 0, %s142
    %s146 = sphi 0, %s145
    %s162 = sphi 0, %s146
  $region4: #{sfb_forward.4} parent=0 // loop_header_branch
    %15 = sbr.rel (%p13) target = $region8
  $region5: #{sfb_forward.4} parent=0 // loop_body
    %s17 = ssub.s32 %s12, 1
    %s18 = ssub.s32 %s12, 2
    %s19 = sadd.s32 %s12, 1
    %s20 = ssub.s32 %s12, %s19
    %p21 = scmp.eq.s32.totalorder %s20, 0
    %s23 = sadd.s32 %s22, 1
    %s24 = scalar_select %p21, %s22, %s23
    %p27 = pneg %p21
    %p28 = scmp.eq.s32.totalorder %s12, 1
    %p29 = por %p27, %p28
    %p30 = scmp.ne.s32.totalorder %s22, %s25
    %p31 = scmp.eq.s32.totalorder %s12, 0
    %p32 = por %p30, %p31
    %p33 = scmp.ne.s32.totalorder %s22, %s25
    %p34 = scmp.eq.s32.totalorder %s17, 1
    %p35 = por %p33, %p34
    %p36 = scmp.ne.s32.totalorder %s25, %s26
    %p37 = scmp.eq.s32.totalorder %s17, 0
    %p38 = por %p36, %p37
    %p39 = scmp.ne.s32.totalorder %s25, %s26
    %p40 = scmp.eq.s32.totalorder %s18, 1
    %p41 = por %p39, %p40
    %p43 = scmp.ne.s32.totalorder %s26, %s42
    %p44 = scmp.eq.s32.totalorder %s18, 0
    %p45 = por %p43, %p44
    %s46 = ssub.s32 %s12, %s19
    %p47 = scmp.eq.s32.totalorder %s46, 0
    %s49 = sadd.s32 %s48, 1
    %s50 = scalar_select %p47, %s48, %s49
    %p53 = pneg %p47
    %p54 = scmp.eq.s32.totalorder %s12, 1
    %p55 = por %p53, %p54
    %p56 = scmp.ne.s32.totalorder %s48, %s51
    %p57 = scmp.eq.s32.totalorder %s12, 0
    %p58 = por %p56, %p57
    %p59 = scmp.ne.s32.totalorder %s48, %s51
    %p60 = scmp.eq.s32.totalorder %s17, 1
    %p61 = por %p59, %p60
    %p62 = scmp.ne.s32.totalorder %s51, %s52
    %p63 = scmp.eq.s32.totalorder %s17, 0
    %p64 = por %p62, %p63
    %p65 = scmp.ne.s32.totalorder %s51, %s52
    %p66 = scmp.eq.s32.totalorder %s18, 1
    %p67 = por %p65, %p66
    %p69 = scmp.ne.s32.totalorder %s52, %s68
    %p70 = scmp.eq.s32.totalorder %s18, 0
    %p71 = por %p69, %p70
    %s73 = sadd.s32 %s72, 1
    %p76 = scmp.eq.s32.totalorder %s12, 1
    %p77 = scmp.ne.s32.totalorder %s72, %s74
    %p78 = scmp.eq.s32.totalorder %s12, 0
    %p79 = por %p77, %p78
    %p80 = scmp.ne.s32.totalorder %s72, %s74
    %p81 = scmp.eq.s32.totalorder %s17, 1
    %p82 = por %p80, %p81
    %p83 = scmp.ne.s32.totalorder %s74, %s75
    %p84 = scmp.eq.s32.totalorder %s17, 0
    %p85 = por %p83, %p84
    %p86 = scmp.ne.s32.totalorder %s74, %s75
    %p87 = scmp.eq.s32.totalorder %s18, 1
    %p88 = por %p86, %p87
    %p90 = scmp.ne.s32.totalorder %s75, %s89
    %p91 = scmp.eq.s32.totalorder %s18, 0
    %p92 = por %p90, %p91
    %s94 = sadd.s32 %s93, 1
    %p97 = scmp.eq.s32.totalorder %s12, 1
    %p98 = scmp.ne.s32.totalorder %s93, %s95
    %p99 = scmp.eq.s32.totalorder %s12, 0
    %p100 = por %p98, %p99
    %p101 = scmp.ne.s32.totalorder %s93, %s95
    %p102 = scmp.eq.s32.totalorder %s17, 1
    %p103 = por %p101, %p102
    %p104 = scmp.ne.s32.totalorder %s95, %s96
    %p105 = scmp.eq.s32.totalorder %s17, 0
    %p106 = por %p104, %p105
    %p107 = scmp.ne.s32.totalorder %s95, %s96
    %p108 = scmp.eq.s32.totalorder %s18, 1
    %p109 = por %p107, %p108
    %p111 = scmp.ne.s32.totalorder %s96, %s110
    %p112 = scmp.eq.s32.totalorder %s18, 0
    %p113 = por %p111, %p112
    %s114 = ssub.s32 %s12, %s19
    %p115 = scmp.eq.s32.totalorder %s114, 0
    %s117 = sadd.s32 %s116, 1
    %s118 = scalar_select %p115, %s116, %s117
    %p121 = pneg %p115
    %p122 = scmp.eq.s32.totalorder %s12, 1
    %p123 = por %p121, %p122
    %p124 = scmp.ne.s32.totalorder %s116, %s119
    %p125 = scmp.eq.s32.totalorder %s12, 0
    %p126 = por %p124, %p125
    %p127 = scmp.ne.s32.totalorder %s116, %s119
    %p128 = scmp.eq.s32.totalorder %s17, 1
    %p129 = por %p127, %p128
    %p130 = scmp.ne.s32.totalorder %s119, %s120
    %p131 = scmp.eq.s32.totalorder %s17, 0
    %p132 = por %p130, %p131
    %p133 = scmp.ne.s32.totalorder %s119, %s120
    %p134 = scmp.eq.s32.totalorder %s18, 1
    %p135 = por %p133, %p134
    %p137 = scmp.ne.s32.totalorder %s120, %s136
    %p138 = scmp.eq.s32.totalorder %s18, 0
    %p139 = por %p137, %p138
    %s140 = ssub.s32 %s12, %s19
    %p141 = scmp.eq.s32.totalorder %s140, 0
    %s143 = sadd.s32 %s142, 1
    %s144 = scalar_select %p141, %s142, %s143
    %p147 = pneg %p141
    %p148 = scmp.eq.s32.totalorder %s12, 1
    %p149 = por %p147, %p148
    %p150 = scmp.ne.s32.totalorder %s142, %s145
    %p151 = scmp.eq.s32.totalorder %s12, 0
    %p152 = por %p150, %p151
    %p153 = scmp.ne.s32.totalorder %s142, %s145
    %p154 = scmp.eq.s32.totalorder %s17, 1
    %p155 = por %p153, %p154
    %p156 = scmp.ne.s32.totalorder %s145, %s146
    %p157 = scmp.eq.s32.totalorder %s17, 0
    %p158 = por %p156, %p157
    %p159 = scmp.ne.s32.totalorder %s145, %s146
    %p160 = scmp.eq.s32.totalorder %s18, 1
    %p161 = por %p159, %p160
    %p163 = scmp.ne.s32.totalorder %s146, %s162
    %p164 = scmp.eq.s32.totalorder %s18, 0
    %p165 = por %p163, %p164
    %p166 = scmp.le.s32.totalorder 1, %s12
    %p167 = scmp.lt.s32.totalorder %s12, 3
    %p168 = pnand %p166, %p167
    %p169 = pneg %p168
    // Predicated region
    $region9: #{sfb_forward.4} parent=5 // pred_check
      _
    $region10: #{sfb_forward.4} parent=5 // pred_check_branch
      %171 = sbr.rel (%p168) target = $region12
    $region11: #{sfb_forward.4} parent=5 // pred_region
      %s172 = ssub.s32 %s12, 1
      // Predicated region
      $region13: #{sfb_forward.4} parent=11 // pred_check
        %p173 = pneg %p85
      $region14: #{sfb_forward.4} parent=11 // pred_check_branch
        %175 = sbr.rel (%p173) target = $region16
      $region15: #{sfb_forward.4} parent=11 // pred_region
        _
      $region16: #{sfb_forward.4} parent=11 // pred_fallthru
        _
      // Predicated region
      $region17: #{sfb_forward.4} parent=11 // pred_check
        %p176 = pneg %p106
      $region18: #{sfb_forward.4} parent=11 // pred_check_branch
        %178 = sbr.rel (%p176) target = $region20
      $region19: #{sfb_forward.4} parent=11 // pred_region
        _
      $region20: #{sfb_forward.4} parent=11 // pred_fallthru
        _
    $region12: #{sfb_forward.4} parent=5 // pred_fallthru
      _
    %p179 = scmp.lt.s32.totalorder %s12, 2
    // Predicated region
    $region21: #{sfb_forward.4} parent=5 // pred_check
      %p180 = pneg %p179
    $region22: #{sfb_forward.4} parent=5 // pred_check_branch
      %182 = sbr.rel (%p180) target = $region24
    $region23: #{sfb_forward.4} parent=5 // pred_region
      // Predicated region
      $region25: #{sfb_forward.4} parent=23 // pred_check
        %p183 = pneg %p32
      $region26: #{sfb_forward.4} parent=23 // pred_check_branch
        %185 = sbr.rel (%p183) target = $region28
      $region27: #{sfb_forward.4} parent=23 // pred_region
        %p186 = scmp.lt.s32.totalorder %s12, 1
        %s187 = scalar_select %p186, %s12, 1
        %s188 = smul.addr %s187, 2
        %s189 = smul.addr %s188, 8
        %s190 = scalar_lea.vmem %s0, %s189
      $region28: #{sfb_forward.4} parent=23 // pred_fallthru
        _
      // Predicated region
      $region29: #{sfb_forward.4} parent=23 // pred_check
        %p191 = pneg %p58
      $region30: #{sfb_forward.4} parent=23 // pred_check_branch
        %193 = sbr.rel (%p191) target = $region32
      $region31: #{sfb_forward.4} parent=23 // pred_region
        %p194 = scmp.lt.s32.totalorder %s12, 1
        %s195 = scalar_select %p194, %s12, 1
        %s196 = smul.addr %s195, 2
        %s197 = smul.addr %s196, 8
        %s198 = scalar_lea.vmem %s1, %s197
      $region32: #{sfb_forward.4} parent=23 // pred_fallthru
        _
    $region24: #{sfb_forward.4} parent=5 // pred_fallthru
      _
    %p199 = scmp.le.s32.totalorder 1, %s12
    %p200 = scmp.lt.s32.totalorder %s12, 3
    %p201 = pnand %p199, %p200
    %p202 = pneg %p201
    // Predicated region
    $region33: #{sfb_forward.4} parent=5 // pred_check
      _
    $region34: #{sfb_forward.4} parent=5 // pred_check_branch
      %204 = sbr.rel (%p201) target = $region36
    $region35: #{sfb_forward.4} parent=5 // pred_region
      %s205 = ssub.s32 %s12, 1
      %p206 = scmp.lt.s32.totalorder %s17, 1
      %s207 = scalar_select %p206, %s17, 1
      %s208 = smul.addr %s207, 2
      %s209 = smul.addr %s208, 8
      %s210 = scalar_lea.vmem %s0, %s209
      %p211 = pneg %p38
      %p212 = pneg %p35
      %p213 = scmp.lt.s32.totalorder %s17, 1
      %s214 = scalar_select %p213, %s17, 1
      %s215 = smul.addr %s214, 2
      %s216 = smul.addr %s215, 8
      %s217 = scalar_lea.vmem %s1, %s216
      %p218 = pneg %p64
      %p219 = pneg %p61
      %p220 = pneg %p85
      %p221 = pneg %p82
      %p222 = pneg %p106
      %p223 = pneg %p103
      %p224 = pneg %p132
      %p225 = pneg %p129
      %p226 = scmp.lt.s32.totalorder %s17, 1
      %s227 = scalar_select %p226, %s17, 1
      %s228 = smul.addr %s227, 2
      %s229 = smul.addr %s228, 8
      %s230 = scalar_lea.vmem %s4, %s229
      %p231 = pneg %p158
      %p232 = pneg %p155
      %p233 = scmp.lt.s32.totalorder %s17, 1
      %s234 = scalar_select %p233, %s17, 1
      %s235 = smul.addr %s234, 2
      %s236 = smul.addr %s235, 8
      %s237 = scalar_lea.vmem %s5, %s236
      %p238 = scmp.lt.s32.totalorder %s17, 1
      %s239 = scalar_select %p238, %s17, 1
      %s240 = smul.addr %s239, 2
      %s241 = smul.addr %s240, 8
      %s242 = scalar_lea.vmem %s0, %s241
      %p243 = scmp.lt.s32.totalorder %s17, 1
      %s244 = scalar_select %p243, %s17, 1
      %s245 = smul.addr %s244, 2
      %s246 = smul.addr %s245, 8
      %s247 = scalar_lea.vmem %s1, %s246
      %p248 = scmp.lt.s32.totalorder %s17, 1
      %s249 = scalar_select %p248, %s17, 1
      %s250 = smul.addr %s249, 2
      %s251 = smul.addr %s250, 8
      %s252 = scalar_lea.vmem %s4, %s251
      %p253 = scmp.lt.s32.totalorder %s17, 1
      %s254 = scalar_select %p253, %s17, 1
      %s255 = smul.addr %s254, 2
      %s256 = smul.addr %s255, 8
      %s257 = scalar_lea.vmem %s5, %s256
      %v258 = vld [vmem:[%s242] sm:$0xff]
      %v259 = vld [vmem:[%s242 + $0x8] sm:$0xff]
      %v260 = vld [vmem:[%s247] sm:$0xff]
      %v261 = vld [vmem:[%s247 + $0x8] sm:$0xff]
      %264 = vrot.lane.b32.xlu0 %v258, 127
      %v265 = vpop.permute.xlu0 %264
      %266 = vrot.lane.b32.xlu0 %v259, 127
      %v267 = vpop.permute.xlu0 %266
      %vm268 = vcmask 1039360
      %v269 = vsel %vm268, %v265, %v267
      %274 = vrot.lane.b32.xlu0 %v260, 127
      %v275 = vpop.permute.xlu0 %274
      %276 = vrot.lane.b32.xlu0 %v261, 127
      %v277 = vpop.permute.xlu0 %276
      %v278 = vsel %vm268, %v275, %v277
      %281 = vrot.lane.b32.xlu0 %v258, 126
      %v282 = vpop.permute.xlu0 %281
      %283 = vrot.lane.b32.xlu0 %v259, 126
      %v284 = vpop.permute.xlu0 %283
      %vm285 = vcmask 1031168
      %v286 = vsel %vm285, %v282, %v284
      %289 = vrot.lane.b32.xlu0 %v260, 126
      %v290 = vpop.permute.xlu0 %289
      %291 = vrot.lane.b32.xlu0 %v261, 126
      %v292 = vpop.permute.xlu0 %291
      %v293 = vsel %vm285, %v290, %v292
      %296 = vrot.lane.b32.xlu0 %v258, 117
      %v297 = vpop.permute.xlu0 %296
      %298 = vrot.lane.b32.xlu0 %v259, 117
      %v299 = vpop.permute.xlu0 %298
      %vm300 = vcmask 957440
      %v301 = vsel %vm300, %v297, %v299
      %304 = vrot.lane.b32.xlu0 %v260, 117
      %v305 = vpop.permute.xlu0 %304
      %306 = vrot.lane.b32.xlu0 %v261, 117
      %v307 = vpop.permute.xlu0 %306
      %v308 = vsel %vm300, %v305, %v307
      %311 = vrot.lane.b32.xlu0 %v258, 116
      %v312 = vpop.permute.xlu0 %311
      %313 = vrot.lane.b32.xlu0 %v259, 116
      %v314 = vpop.permute.xlu0 %313
      %vm315 = vcmask 949248
      %v316 = vsel %vm315, %v312, %v314
      %319 = vrot.lane.b32.xlu0 %v260, 116
      %v320 = vpop.permute.xlu0 %319
      %321 = vrot.lane.b32.xlu0 %v261, 116
      %v322 = vpop.permute.xlu0 %321
      %v323 = vsel %vm315, %v320, %v322
      %326 = vrot.lane.b32.xlu0 %v258, 115
      %v327 = vpop.permute.xlu0 %326
      %328 = vrot.lane.b32.xlu0 %v259, 115
      %v329 = vpop.permute.xlu0 %328
      %vm330 = vcmask 941056
      %v331 = vsel %vm330, %v327, %v329
      %334 = vrot.lane.b32.xlu0 %v260, 115
      %v335 = vpop.permute.xlu0 %334
      %336 = vrot.lane.b32.xlu0 %v261, 115
      %v337 = vpop.permute.xlu0 %336
      %v338 = vsel %vm330, %v335, %v337
      %341 = vrot.lane.b32.xlu0 %v258, 106
      %v342 = vpop.permute.xlu0 %341
      %343 = vrot.lane.b32.xlu0 %v259, 106
      %v344 = vpop.permute.xlu0 %343
      %vm345 = vcmask 867328
      %v346 = vsel %vm345, %v342, %v344
      %349 = vrot.lane.b32.xlu0 %v260, 106
      %v350 = vpop.permute.xlu0 %349
      %351 = vrot.lane.b32.xlu0 %v261, 106
      %v352 = vpop.permute.xlu0 %351
      %v353 = vsel %vm345, %v350, %v352
      %356 = vrot.lane.b32.xlu0 %v258, 105
      %v357 = vpop.permute.xlu0 %356
      %358 = vrot.lane.b32.xlu0 %v259, 105
      %v359 = vpop.permute.xlu0 %358
      %vm360 = vcmask 859136
      %v361 = vsel %vm360, %v357, %v359
      %364 = vrot.lane.b32.xlu0 %v260, 105
      %v365 = vpop.permute.xlu0 %364
      %366 = vrot.lane.b32.xlu0 %v261, 105
      %v367 = vpop.permute.xlu0 %366
      %v368 = vsel %vm360, %v365, %v367
      %371 = vrot.lane.b32.xlu0 %v258, 104
      %v372 = vpop.permute.xlu0 %371
      %373 = vrot.lane.b32.xlu0 %v259, 104
      %v374 = vpop.permute.xlu0 %373
      %375 = vrot.lane.b32.xlu0 %v260, 104
      %v376 = vpop.permute.xlu0 %375
      %377 = vrot.lane.b32.xlu0 %v261, 104
      %v378 = vpop.permute.xlu0 %377
      %vm379 = vcmask 850944
      %v380 = vsel %vm379, %v372, %v374
      %v381 = vsel %vm379, %v376, %v378
      %v386 = vld [vmem:[%s2] sm:$0xff]
      %v387 = vld [vmem:[%s2 + $0x8] sm:$0xff]
      %v388 = vld [vmem:[%s2 + $0x10] sm:$0xff]
      %v389 = vld [vmem:[%s2 + $0x18] sm:$0xff]
      %v390 = vld [vmem:[%s3] sm:$0xff]
      %v391 = vld [vmem:[%s3 + $0x8] sm:$0xff]
      %393 = vset.pattern.permute.xlu0 0
      %394 = vperm.xlu0 %393, %v390
      %v395 = vpop.permute.xlu0 %394
      %398 = vset.pattern.permute.xlu0 0
      %399 = vperm.xlu0 %398, %v391
      %v400 = vpop.permute.xlu0 %399
      %vm402 = vcmask 130048
      %v404 = vsel %vm402, %v387, 0
      %v407 = vsel %vm402, %v389, 0
      %409 = vmatpush.msra.mxu0 %v368
      %410 = vmatpush.msra.mxu0 %v361
      %411 = vmatpush.msra.mxu0 %v353
      %412 = vmatpush.msra.mxu0 %v346
      %413 = vmatpush.msra.mxu0 %v338
      %414 = vmatpush.msra.mxu0 %v331
      %415 = vmatpush.msra.mxu0 %v323
      %416 = vmatpush.msra.mxu0 %v316
      %417 = vmatpush.msra.mxu0 %v308
      %418 = vmatpush.msra.mxu0 %v301
      %419 = vmatpush.msra.mxu0 %v293
      %420 = vmatpush.msra.mxu0 %v286
      %421 = vmatpush.msra.mxu0 %v278
      %422 = vmatpush.msra.mxu0 %v269
      %423 = vmatpush.msra.mxu0 %v260
      %424 = vmatpush.msra.mxu0 %v258
      %425 = vmatmul.f32.gmra.mxu0 %v386
      %v426 = vpop.f32.mrf.mxu0
      %v427 = vadd.f32 %v395, %v426
      %428 = vmatmul.f32.gmra.mxu0 %v388
      %v429 = vpop.f32.mrf.mxu0
      %v430 = vadd.f32 %v400, %v429
      %431 = vdwg.mxu0
      %432 = vmatpush.msra.mxu0 0.0
      %433 = vmatpush.msra.mxu0 0.0
      %434 = vmatpush.msra.mxu0 0.0
      %435 = vmatpush.msra.mxu0 0.0
      %436 = vmatpush.msra.mxu0 0.0
      %437 = vmatpush.msra.mxu0 0.0
      %438 = vmatpush.msra.mxu0 0.0
      %439 = vmatpush.msra.mxu0 0.0
      %440 = vmatpush.msra.mxu0 0.0
      %441 = vmatpush.msra.mxu0 0.0
      %442 = vmatpush.msra.mxu0 0.0
      %443 = vmatpush.msra.mxu0 0.0
      %444 = vmatpush.msra.mxu0 0.0
      %445 = vmatpush.msra.mxu0 0.0
      %446 = vmatpush.msra.mxu0 %v381
      %447 = vmatpush.msra.mxu0 %v380
      %448 = vmatmul.f32.gmra.mxu0 %v404
      %v449 = vpop.f32.mrf.mxu0
      %v450 = vadd.f32 %v427, %v449
      %451 = vmatmul.f32.gmra.mxu0 %v407
      %v452 = vpop.f32.mrf.mxu0
      %v453 = vadd.f32 %v430, %v452
      %454 = vdwg.mxu0
      %455 = vmatpush.msra.mxu0 %v367
      %456 = vmatpush.msra.mxu0 %v359
      %457 = vmatpush.msra.mxu0 %v352
      %458 = vmatpush.msra.mxu0 %v344
      %459 = vmatpush.msra.mxu0 %v337
      %460 = vmatpush.msra.mxu0 %v329
      %461 = vmatpush.msra.mxu0 %v322
      %462 = vmatpush.msra.mxu0 %v314
      %463 = vmatpush.msra.mxu0 %v307
      %464 = vmatpush.msra.mxu0 %v299
      %465 = vmatpush.msra.mxu0 %v292
      %466 = vmatpush.msra.mxu0 %v284
      %467 = vmatpush.msra.mxu0 %v277
      %468 = vmatpush.msra.mxu0 %v267
      %469 = vmatpush.msra.mxu0 %v261
      %470 = vmatpush.msra.mxu0 %v259
      %471 = vmatmul.f32.gmra.mxu0 %v386
      %v472 = vpop.f32.mrf.mxu0
      %v473 = vadd.f32 %v395, %v472
      %474 = vmatmul.f32.gmra.mxu0 %v388
      %v475 = vpop.f32.mrf.mxu0
      %v476 = vadd.f32 %v400, %v475
      %477 = vdwg.mxu0
      %478 = vmatpush.msra.mxu0 0.0
      %479 = vmatpush.msra.mxu0 0.0
      %480 = vmatpush.msra.mxu0 0.0
      %481 = vmatpush.msra.mxu0 0.0
      %482 = vmatpush.msra.mxu0 0.0
      %483 = vmatpush.msra.mxu0 0.0
      %484 = vmatpush.msra.mxu0 0.0
      %485 = vmatpush.msra.mxu0 0.0
      %486 = vmatpush.msra.mxu0 0.0
      %487 = vmatpush.msra.mxu0 0.0
      %488 = vmatpush.msra.mxu0 0.0
      %489 = vmatpush.msra.mxu0 0.0
      %490 = vmatpush.msra.mxu0 0.0
      %491 = vmatpush.msra.mxu0 0.0
      %492 = vmatpush.msra.mxu0 %v378
      %493 = vmatpush.msra.mxu0 %v374
      %494 = vmatmul.f32.gmra.mxu0 %v404
      %v495 = vpop.f32.mrf.mxu0
      %v496 = vadd.f32 %v473, %v495
      %497 = vmatmul.f32.gmra.mxu0 %v407
      %v498 = vpop.f32.mrf.mxu0
      %v499 = vadd.f32 %v476, %v498
      %500 = vdwg.mxu0
      %vm501 = vcmp.ge.f32.partialorder %v450, 0.0
      %vm502 = vcmp.ge.f32.partialorder %v496, 0.0
      %vm503 = vcmp.ge.f32.partialorder %v453, 0.0
      %vm504 = vcmp.ge.f32.partialorder %v499, 0.0
      %v505 = vmul.f32 %v450, 0.01
      %v506 = vmul.f32 %v496, 0.01
      %v507 = vmul.f32 %v453, 0.01
      %v508 = vmul.f32 %v499, 0.01
      %v509 = vsel %vm501, %v450, %v505
      %v510 = vsel %vm502, %v496, %v506
      %v511 = vsel %vm503, %v453, %v507
      %v512 = vsel %vm504, %v499, %v508
      %513 = vst [vmem:[%s252] sm:$0xff] %v509
      %vm514 = vcmask 392192
      %515 = vst.msk [vmem:[%s252 + $0x8] sm:$0xff] %vm514, %v510
      %516 = vst [vmem:[%s257] sm:$0xff] %v511
      %517 = vst.msk [vmem:[%s257 + $0x8] sm:$0xff] %vm514, %v512
      %p518 = scmp.lt.s32.totalorder %s17, 1
      %s519 = scalar_select %p518, %s17, 1
      %s520 = smul.addr %s519, 2
      %s521 = smul.addr %s520, 8
      %s522 = scalar_lea.vmem %s4, %s521
      %p523 = scmp.lt.s32.totalorder %s17, 1
      %s524 = scalar_select %p523, %s17, 1
      %s525 = smul.addr %s524, 2
      %s526 = smul.addr %s525, 8
      %s527 = scalar_lea.vmem %s5, %s526
      // Predicated region
      $region37: #{sfb_forward.4} parent=35 // pred_check
        %p528 = pneg %p129
      $region38: #{sfb_forward.4} parent=35 // pred_check_branch
        %530 = sbr.rel (%p528) target = $region40
      $region39: #{sfb_forward.4} parent=35 // pred_region
        _
      $region40: #{sfb_forward.4} parent=35 // pred_fallthru
        _
      // Predicated region
      $region41: #{sfb_forward.4} parent=35 // pred_check
        %p531 = pneg %p155
      $region42: #{sfb_forward.4} parent=35 // pred_check_branch
        %533 = sbr.rel (%p531) target = $region44
      $region43: #{sfb_forward.4} parent=35 // pred_region
        _
      $region44: #{sfb_forward.4} parent=35 // pred_fallthru
        _
    $region36: #{sfb_forward.4} parent=5 // pred_fallthru
      _
    %p534 = scmp.le.s32.totalorder 2, %s12
    // Predicated region
    $region45: #{sfb_forward.4} parent=5 // pred_check
      %p535 = pneg %p534
    $region46: #{sfb_forward.4} parent=5 // pred_check_branch
      %537 = sbr.rel (%p535) target = $region48
    $region47: #{sfb_forward.4} parent=5 // pred_region
      %s538 = ssub.s32 %s12, 2
      // Predicated region
      $region49: #{sfb_forward.4} parent=47 // pred_check
        %p539 = pneg %p135
      $region50: #{sfb_forward.4} parent=47 // pred_check_branch
        %541 = sbr.rel (%p539) target = $region52
      $region51: #{sfb_forward.4} parent=47 // pred_region
        %p542 = scmp.lt.s32.totalorder %s18, 1
        %s543 = scalar_select %p542, %s18, 1
        %s544 = smul.addr %s543, 2
        %s545 = smul.addr %s544, 8
        %s546 = scalar_lea.vmem %s4, %s545
      $region52: #{sfb_forward.4} parent=47 // pred_fallthru
        _
      // Predicated region
      $region53: #{sfb_forward.4} parent=47 // pred_check
        %p547 = pneg %p161
      $region54: #{sfb_forward.4} parent=47 // pred_check_branch
        %549 = sbr.rel (%p547) target = $region56
      $region55: #{sfb_forward.4} parent=47 // pred_region
        %p550 = scmp.lt.s32.totalorder %s18, 1
        %s551 = scalar_select %p550, %s18, 1
        %s552 = smul.addr %s551, 2
        %s553 = smul.addr %s552, 8
        %s554 = scalar_lea.vmem %s5, %s553
      $region56: #{sfb_forward.4} parent=47 // pred_fallthru
        _
    $region48: #{sfb_forward.4} parent=5 // pred_fallthru
      _
  $region6: #{sfb_forward.4} parent=0 // loop_footer
    %s16 = sadd.s32 1, %s12
  $region7: #{sfb_forward.4} parent=0 // loop_footer_branch
    %11 = sbr.rel target = $region3
  $region8: #{sfb_forward.4} parent=0 // loop_exit
    _

// kernel: reverse.1
$region0: #{reverse.1}
  %s0 = inlined_call_operand.vmem [shape: f32[2,8,16,7], index: 0, kind: input, shape index: {}]
  %s1 = inlined_call_operand.vmem [shape: f32[2,8,16,7], index: 1, kind: output, shape index: {}]
  $region1: #{reverse.1} parent=0
    #allocation0 [shape = 'u8[131072]{0}', space=vmem, size = 0x20000, scoped, tag = 'operand span for operand 0']
    #allocation1 [shape = 'u8[65536]{0}', space=vmem, size = 0x10000, scoped, tag = 'operand span for operand 1']
    %s2 = scalar_lea.vmem [#allocation0], 8
    // Predicated region
    $region2: #{reverse.1} parent=1 // pred_check
      _
    $region3: #{reverse.1} parent=1 // pred_check_branch
      %4 = sbr.rel (0) target = $region5
    $region4: #{reverse.1} parent=1 // pred_region
      // Predicated region
      $region6: #{reverse.1} parent=4 // pred_check
        _
      $region7: #{reverse.1} parent=4 // pred_check_branch
        %6 = sbr.rel (0) target = $region9
      $region8: #{reverse.1} parent=4 // pred_region
        // Predicated region
        $region21: #{reverse.1} parent=8 // pred_check
          _
        $region22: #{reverse.1} parent=8 // pred_check_branch
          %52 = sbr.rel (0) target = $region24
        $region23: #{reverse.1} parent=8 // pred_region
          loop: start=0, step=1, limit=1
          $region25: #{reverse.1} parent=23 // loop_pre_header
            _
          $region26: #{reverse.1} parent=23 // loop_header
            %s54 = sphi 0, %s58
            %p55 = scmp.ge.s32.totalorder %s54, 1
            %s59 = sphi %s0, %s0
            %s60 = sphi %s2, %s2
          $region27: #{reverse.1} parent=23 // loop_header_branch
            %57 = sbr.rel (%p55) target = $region31
          $region28: #{reverse.1} parent=23 // loop_body
            %v61 = vld [vmem:[%s59] sm:$0xff]
            %62 = vst [vmem:[%s60] sm:$0xff] %v61
            %v63 = vld [vmem:[%s59 + $0x8] sm:$0xff]
            %64 = vst [vmem:[%s60 + $0x10] sm:$0xff] %v63
            %v65 = vld [vmem:[%s59 + $0x10] sm:$0xff]
            %66 = vst [vmem:[%s60 + $0x20] sm:$0xff] %v65
            %v67 = vld [vmem:[%s59 + $0x18] sm:$0xff]
            %68 = vst [vmem:[%s60 + $0x30] sm:$0xff] %v67
            %v69 = vld [vmem:[%s59 + $0x20] sm:$0xff]
            %70 = vst [vmem:[%s60 + $0x40] sm:$0xff] %v69
            %v71 = vld [vmem:[%s59 + $0x28] sm:$0xff]
            %72 = vst [vmem:[%s60 + $0x50] sm:$0xff] %v71
            %v73 = vld [vmem:[%s59 + $0x30] sm:$0xff]
            %74 = vst [vmem:[%s60 + $0x60] sm:$0xff] %v73
            %v75 = vld [vmem:[%s59 + $0x38] sm:$0xff]
            %76 = vst [vmem:[%s60 + $0x70] sm:$0xff] %v75
            %v77 = vld [vmem:[%s59 + $0x40] sm:$0xff]
            %78 = vst [vmem:[%s60 + $0x80] sm:$0xff] %v77
            %v79 = vld [vmem:[%s59 + $0x48] sm:$0xff]
            %80 = vst [vmem:[%s60 + $0x90] sm:$0xff] %v79
            %v81 = vld [vmem:[%s59 + $0x50] sm:$0xff]
            %82 = vst [vmem:[%s60 + $0xa0] sm:$0xff] %v81
            %v83 = vld [vmem:[%s59 + $0x58] sm:$0xff]
            %84 = vst [vmem:[%s60 + $0xb0] sm:$0xff] %v83
            %v85 = vld [vmem:[%s59 + $0x60] sm:$0xff]
            %86 = vst [vmem:[%s60 + $0xc0] sm:$0xff] %v85
            %v87 = vld [vmem:[%s59 + $0x68] sm:$0xff]
            %88 = vst [vmem:[%s60 + $0xd0] sm:$0xff] %v87
            %v89 = vld [vmem:[%s59 + $0x70] sm:$0xff]
            %90 = vst [vmem:[%s60 + $0xe0] sm:$0xff] %v89
            %v91 = vld [vmem:[%s59 + $0x78] sm:$0xff]
            %92 = vst [vmem:[%s60 + $0xf0] sm:$0xff] %v91
          $region29: #{reverse.1} parent=23 // loop_footer
            %s58 = sadd.s32 1, %s54
          $region30: #{reverse.1} parent=23 // loop_footer_branch
            %53 = sbr.rel target = $region26
          $region31: #{reverse.1} parent=23 // loop_exit
            _
        $region24: #{reverse.1} parent=8 // pred_fallthru
          _
        // Predicated region
        $region32: #{reverse.1} parent=8 // pred_check
          _
        $region33: #{reverse.1} parent=8 // pred_check_branch
          %94 = sbr.rel target = $region35
        $region34: #{reverse.1} parent=8 // pred_region
          _
        $region35: #{reverse.1} parent=8 // pred_fallthru
          _
      $region9: #{reverse.1} parent=4 // pred_fallthru
        _
      // Predicated region
      $region10: #{reverse.1} parent=4 // pred_check
        _
      $region11: #{reverse.1} parent=4 // pred_check_branch
        %8 = sbr.rel target = $region13
      $region12: #{reverse.1} parent=4 // pred_region
        %s10 = ssub.s32 256, 1
        loop: start=0, step=1, limit=1
        $region14: #{reverse.1} parent=12 // loop_pre_header
          _
        $region15: #{reverse.1} parent=12 // loop_header
          %s12 = sphi 0, %s16
          %p13 = scmp.ge.s32.totalorder %s12, 1
          %s17 = sphi %s0, %s0
          %s18 = sphi %s2, %s2
        $region16: #{reverse.1} parent=12 // loop_header_branch
          %15 = sbr.rel (%p13) target = $region20
        $region17: #{reverse.1} parent=12 // loop_body
          %v19 = vld [vmem:[%s17] sm:%s10]
          %20 = vst [vmem:[%s18] sm:%s10] %v19
          %v21 = vld [vmem:[%s17 + $0x8] sm:%s10]
          %22 = vst [vmem:[%s18 + $0x10] sm:%s10] %v21
          %v23 = vld [vmem:[%s17 + $0x10] sm:%s10]
          %24 = vst [vmem:[%s18 + $0x20] sm:%s10] %v23
          %v25 = vld [vmem:[%s17 + $0x18] sm:%s10]
          %26 = vst [vmem:[%s18 + $0x30] sm:%s10] %v25
          %v27 = vld [vmem:[%s17 + $0x20] sm:%s10]
          %28 = vst [vmem:[%s18 + $0x40] sm:%s10] %v27
          %v29 = vld [vmem:[%s17 + $0x28] sm:%s10]
          %30 = vst [vmem:[%s18 + $0x50] sm:%s10] %v29
          %v31 = vld [vmem:[%s17 + $0x30] sm:%s10]
          %32 = vst [vmem:[%s18 + $0x60] sm:%s10] %v31
          %v33 = vld [vmem:[%s17 + $0x38] sm:%s10]
          %34 = vst [vmem:[%s18 + $0x70] sm:%s10] %v33
          %v35 = vld [vmem:[%s17 + $0x40] sm:%s10]
          %36 = vst [vmem:[%s18 + $0x80] sm:%s10] %v35
          %v37 = vld [vmem:[%s17 + $0x48] sm:%s10]
          %38 = vst [vmem:[%s18 + $0x90] sm:%s10] %v37
          %v39 = vld [vmem:[%s17 + $0x50] sm:%s10]
          %40 = vst [vmem:[%s18 + $0xa0] sm:%s10] %v39
          %v41 = vld [vmem:[%s17 + $0x58] sm:%s10]
          %42 = vst [vmem:[%s18 + $0xb0] sm:%s10] %v41
          %v43 = vld [vmem:[%s17 + $0x60] sm:%s10]
          %44 = vst [vmem:[%s18 + $0xc0] sm:%s10] %v43
          %v45 = vld [vmem:[%s17 + $0x68] sm:%s10]
          %46 = vst [vmem:[%s18 + $0xd0] sm:%s10] %v45
          %v47 = vld [vmem:[%s17 + $0x70] sm:%s10]
          %48 = vst [vmem:[%s18 + $0xe0] sm:%s10] %v47
          %v49 = vld [vmem:[%s17 + $0x78] sm:%s10]
          %50 = vst [vmem:[%s18 + $0xf0] sm:%s10] %v49
        $region18: #{reverse.1} parent=12 // loop_footer
          %s16 = sadd.s32 1, %s12
        $region19: #{reverse.1} parent=12 // loop_footer_branch
          %11 = sbr.rel target = $region15
        $region20: #{reverse.1} parent=12 // loop_exit
          _
      $region13: #{reverse.1} parent=4 // pred_fallthru
        _
    $region5: #{reverse.1} parent=1 // pred_fallthru
      _
    %95 = vnop
    %s96 = scalar_lea.vmem [#allocation0], 7
    %v97 = vld [vmem:[%s96] ss:$-1 sm:$0xff]
    %v98 = vrot.slane %v97, 1
    %99 = vst [vmem:[#allocation1] sm:$0xff] %v98
    %s100 = scalar_lea.vmem [#allocation0], 8
    %s101 = scalar_lea.vmem %s100, 7 [#allocation0]
    %v102 = vld [vmem:[%s101] ss:$-1 sm:$0xff]
    %v103 = vrot.slane %v102, 1
    %v104 = vlaneseq
    %v105 = vshrl.u32 %v104, 7
    %vm106 = vcmp.lt.s32.totalorder %v105, 7
    %107 = vst.msk [vmem:[#allocation1] sm:$0xff] %vm106, %v103
    %s108 = scalar_lea.vmem [#allocation1], 8
    %s109 = scalar_lea.vmem [#allocation0], 16
    %s110 = scalar_lea.vmem %s109, 7 [#allocation0]
    %v111 = vld [vmem:[%s110] ss:$-1 sm:$0xff]
    %v112 = vrot.slane %v111, 1
    %113 = vst [vmem:[%s108] sm:$0xff] %v112
    %s114 = scalar_lea.vmem %s109, 8 [#allocation0]
    %s115 = scalar_lea.vmem %s114, 7 [#allocation0]
    %v116 = vld [vmem:[%s115] ss:$-1 sm:$0xff]
    %v117 = vrot.slane %v116, 1
    %v118 = vlaneseq
    %v119 = vshrl.u32 %v118, 7
    %vm120 = vcmp.lt.s32.totalorder %v119, 7
    %121 = vst.msk [vmem:[%s108] sm:$0xff] %vm120, %v117
    %s122 = scalar_lea.vmem [#allocation1], 16
    %s123 = scalar_lea.vmem [#allocation0], 32
    %s124 = scalar_lea.vmem %s123, 7 [#allocation0]
    %v125 = vld [vmem:[%s124] ss:$-1 sm:$0xff]
    %v126 = vrot.slane %v125, 1
    %127 = vst [vmem:[%s122] sm:$0xff] %v126
    %s128 = scalar_lea.vmem %s123, 8 [#allocation0]
    %s129 = scalar_lea.vmem %s128, 7 [#allocation0]
    %v130 = vld [vmem:[%s129] ss:$-1 sm:$0xff]
    %v131 = vrot.slane %v130, 1
    %v132 = vlaneseq
    %v133 = vshrl.u32 %v132, 7
    %vm134 = vcmp.lt.s32.totalorder %v133, 7
    %135 = vst.msk [vmem:[%s122] sm:$0xff] %vm134, %v131
    %s136 = scalar_lea.vmem [#allocation1], 24
    %s137 = scalar_lea.vmem [#allocation0], 48
    %s138 = scalar_lea.vmem %s137, 7 [#allocation0]
    %v139 = vld [vmem:[%s138] ss:$-1 sm:$0xff]
    %v140 = vrot.slane %v139, 1
    %141 = vst [vmem:[%s136] sm:$0xff] %v140
    %s142 = scalar_lea.vmem %s137, 8 [#allocation0]
    %s143 = scalar_lea.vmem %s142, 7 [#allocation0]
    %v144 = vld [vmem:[%s143] ss:$-1 sm:$0xff]
    %v145 = vrot.slane %v144, 1
    %v146 = vlaneseq
    %v147 = vshrl.u32 %v146, 7
    %vm148 = vcmp.lt.s32.totalorder %v147, 7
    %149 = vst.msk [vmem:[%s136] sm:$0xff] %vm148, %v145
    %s150 = scalar_lea.vmem [#allocation1], 32
    %s151 = scalar_lea.vmem [#allocation0], 64
    %s152 = scalar_lea.vmem %s151, 7 [#allocation0]
    %v153 = vld [vmem:[%s152] ss:$-1 sm:$0xff]
    %v154 = vrot.slane %v153, 1
    %155 = vst [vmem:[%s150] sm:$0xff] %v154
    %s156 = scalar_lea.vmem %s151, 8 [#allocation0]
    %s157 = scalar_lea.vmem %s156, 7 [#allocation0]
    %v158 = vld [vmem:[%s157] ss:$-1 sm:$0xff]
    %v159 = vrot.slane %v158, 1
    %v160 = vlaneseq
    %v161 = vshrl.u32 %v160, 7
    %vm162 = vcmp.lt.s32.totalorder %v161, 7
    %163 = vst.msk [vmem:[%s150] sm:$0xff] %vm162, %v159
    %s164 = scalar_lea.vmem [#allocation1], 40
    %s165 = scalar_lea.vmem [#allocation0], 80
    %s166 = scalar_lea.vmem %s165, 7 [#allocation0]
    %v167 = vld [vmem:[%s166] ss:$-1 sm:$0xff]
    %v168 = vrot.slane %v167, 1
    %169 = vst [vmem:[%s164] sm:$0xff] %v168
    %s170 = scalar_lea.vmem %s165, 8 [#allocation0]
    %s171 = scalar_lea.vmem %s170, 7 [#allocation0]
    %v172 = vld [vmem:[%s171] ss:$-1 sm:$0xff]
    %v173 = vrot.slane %v172, 1
    %v174 = vlaneseq
    %v175 = vshrl.u32 %v174, 7
    %vm176 = vcmp.lt.s32.totalorder %v175, 7
    %177 = vst.msk [vmem:[%s164] sm:$0xff] %vm176, %v173
    %s178 = scalar_lea.vmem [#allocation1], 48
    %s179 = scalar_lea.vmem [#allocation0], 96
    %s180 = scalar_lea.vmem %s179, 7 [#allocation0]
    %v181 = vld [vmem:[%s180] ss:$-1 sm:$0xff]
    %v182 = vrot.slane %v181, 1
    %183 = vst [vmem:[%s178] sm:$0xff] %v182
    %s184 = scalar_lea.vmem %s179, 8 [#allocation0]
    %s185 = scalar_lea.vmem %s184, 7 [#allocation0]
    %v186 = vld [vmem:[%s185] ss:$-1 sm:$0xff]
    %v187 = vrot.slane %v186, 1
    %v188 = vlaneseq
    %v189 = vshrl.u32 %v188, 7
    %vm190 = vcmp.lt.s32.totalorder %v189, 7
    %191 = vst.msk [vmem:[%s178] sm:$0xff] %vm190, %v187
    %s192 = scalar_lea.vmem [#allocation1], 56
    %s193 = scalar_lea.vmem [#allocation0], 112
    %s194 = scalar_lea.vmem %s193, 7 [#allocation0]
    %v195 = vld [vmem:[%s194] ss:$-1 sm:$0xff]
    %v196 = vrot.slane %v195, 1
    %197 = vst [vmem:[%s192] sm:$0xff] %v196
    %s198 = scalar_lea.vmem %s193, 8 [#allocation0]
    %s199 = scalar_lea.vmem %s198, 7 [#allocation0]
    %v200 = vld [vmem:[%s199] ss:$-1 sm:$0xff]
    %v201 = vrot.slane %v200, 1
    %v202 = vlaneseq
    %v203 = vshrl.u32 %v202, 7
    %vm204 = vcmp.lt.s32.totalorder %v203, 7
    %205 = vst.msk [vmem:[%s192] sm:$0xff] %vm204, %v201
    %s206 = scalar_lea.vmem [#allocation1], 64
    %s207 = scalar_lea.vmem [#allocation0], 128
    %s208 = scalar_lea.vmem %s207, 7 [#allocation0]
    %v209 = vld [vmem:[%s208] ss:$-1 sm:$0xff]
    %v210 = vrot.slane %v209, 1
    %211 = vst [vmem:[%s206] sm:$0xff] %v210
    %s212 = scalar_lea.vmem %s207, 8 [#allocation0]
    %s213 = scalar_lea.vmem %s212, 7 [#allocation0]
    %v214 = vld [vmem:[%s213] ss:$-1 sm:$0xff]
    %v215 = vrot.slane %v214, 1
    %v216 = vlaneseq
    %v217 = vshrl.u32 %v216, 7
    %vm218 = vcmp.lt.s32.totalorder %v217, 7
    %219 = vst.msk [vmem:[%s206] sm:$0xff] %vm218, %v215
    %s220 = scalar_lea.vmem [#allocation1], 72
    %s221 = scalar_lea.vmem [#allocation0], 144
    %s222 = scalar_lea.vmem %s221, 7 [#allocation0]
    %v223 = vld [vmem:[%s222] ss:$-1 sm:$0xff]
    %v224 = vrot.slane %v223, 1
    %225 = vst [vmem:[%s220] sm:$0xff] %v224
    %s226 = scalar_lea.vmem %s221, 8 [#allocation0]
    %s227 = scalar_lea.vmem %s226, 7 [#allocation0]
    %v228 = vld [vmem:[%s227] ss:$-1 sm:$0xff]
    %v229 = vrot.slane %v228, 1
    %v230 = vlaneseq
    %v231 = vshrl.u32 %v230, 7
    %vm232 = vcmp.lt.s32.totalorder %v231, 7
    %233 = vst.msk [vmem:[%s220] sm:$0xff] %vm232, %v229
    %s234 = scalar_lea.vmem [#allocation1], 80
    %s235 = scalar_lea.vmem [#allocation0], 160
    %s236 = scalar_lea.vmem %s235, 7 [#allocation0]
    %v237 = vld [vmem:[%s236] ss:$-1 sm:$0xff]
    %v238 = vrot.slane %v237, 1
    %239 = vst [vmem:[%s234] sm:$0xff] %v238
    %s240 = scalar_lea.vmem %s235, 8 [#allocation0]
    %s241 = scalar_lea.vmem %s240, 7 [#allocation0]
    %v242 = vld [vmem:[%s241] ss:$-1 sm:$0xff]
    %v243 = vrot.slane %v242, 1
    %v244 = vlaneseq
    %v245 = vshrl.u32 %v244, 7
    %vm246 = vcmp.lt.s32.totalorder %v245, 7
    %247 = vst.msk [vmem:[%s234] sm:$0xff] %vm246, %v243
    %s248 = scalar_lea.vmem [#allocation1], 88
    %s249 = scalar_lea.vmem [#allocation0], 176
    %s250 = scalar_lea.vmem %s249, 7 [#allocation0]
    %v251 = vld [vmem:[%s250] ss:$-1 sm:$0xff]
    %v252 = vrot.slane %v251, 1
    %253 = vst [vmem:[%s248] sm:$0xff] %v252
    %s254 = scalar_lea.vmem %s249, 8 [#allocation0]
    %s255 = scalar_lea.vmem %s254, 7 [#allocation0]
    %v256 = vld [vmem:[%s255] ss:$-1 sm:$0xff]
    %v257 = vrot.slane %v256, 1
    %v258 = vlaneseq
    %v259 = vshrl.u32 %v258, 7
    %vm260 = vcmp.lt.s32.totalorder %v259, 7
    %261 = vst.msk [vmem:[%s248] sm:$0xff] %vm260, %v257
    %s262 = scalar_lea.vmem [#allocation1], 96
    %s263 = scalar_lea.vmem [#allocation0], 192
    %s264 = scalar_lea.vmem %s263, 7 [#allocation0]
    %v265 = vld [vmem:[%s264] ss:$-1 sm:$0xff]
    %v266 = vrot.slane %v265, 1
    %267 = vst [vmem:[%s262] sm:$0xff] %v266
    %s268 = scalar_lea.vmem %s263, 8 [#allocation0]
    %s269 = scalar_lea.vmem %s268, 7 [#allocation0]
    %v270 = vld [vmem:[%s269] ss:$-1 sm:$0xff]
    %v271 = vrot.slane %v270, 1
    %v272 = vlaneseq
    %v273 = vshrl.u32 %v272, 7
    %vm274 = vcmp.lt.s32.totalorder %v273, 7
    %275 = vst.msk [vmem:[%s262] sm:$0xff] %vm274, %v271
    %s276 = scalar_lea.vmem [#allocation1], 104
    %s277 = scalar_lea.vmem [#allocation0], 208
    %s278 = scalar_lea.vmem %s277, 7 [#allocation0]
    %v279 = vld [vmem:[%s278] ss:$-1 sm:$0xff]
    %v280 = vrot.slane %v279, 1
    %281 = vst [vmem:[%s276] sm:$0xff] %v280
    %s282 = scalar_lea.vmem %s277, 8 [#allocation0]
    %s283 = scalar_lea.vmem %s282, 7 [#allocation0]
    %v284 = vld [vmem:[%s283] ss:$-1 sm:$0xff]
    %v285 = vrot.slane %v284, 1
    %v286 = vlaneseq
    %v287 = vshrl.u32 %v286, 7
    %vm288 = vcmp.lt.s32.totalorder %v287, 7
    %289 = vst.msk [vmem:[%s276] sm:$0xff] %vm288, %v285
    %s290 = scalar_lea.vmem [#allocation1], 112
    %s291 = scalar_lea.vmem [#allocation0], 224
    %s292 = scalar_lea.vmem %s291, 7 [#allocation0]
    %v293 = vld [vmem:[%s292] ss:$-1 sm:$0xff]
    %v294 = vrot.slane %v293, 1
    %295 = vst [vmem:[%s290] sm:$0xff] %v294
    %s296 = scalar_lea.vmem %s291, 8 [#allocation0]
    %s297 = scalar_lea.vmem %s296, 7 [#allocation0]
    %v298 = vld [vmem:[%s297] ss:$-1 sm:$0xff]
    %v299 = vrot.slane %v298, 1
    %v300 = vlaneseq
    %v301 = vshrl.u32 %v300, 7
    %vm302 = vcmp.lt.s32.totalorder %v301, 7
    %303 = vst.msk [vmem:[%s290] sm:$0xff] %vm302, %v299
    %s304 = scalar_lea.vmem [#allocation1], 120
    %s305 = scalar_lea.vmem [#allocation0], 240
    %s306 = scalar_lea.vmem %s305, 7 [#allocation0]
    %v307 = vld [vmem:[%s306] ss:$-1 sm:$0xff]
    %v308 = vrot.slane %v307, 1
    %309 = vst [vmem:[%s304] sm:$0xff] %v308
    %s310 = scalar_lea.vmem %s305, 8 [#allocation0]
    %s311 = scalar_lea.vmem %s310, 7 [#allocation0]
    %v312 = vld [vmem:[%s311] ss:$-1 sm:$0xff]
    %v313 = vrot.slane %v312, 1
    %v314 = vlaneseq
    %v315 = vshrl.u32 %v314, 7
    %vm316 = vcmp.lt.s32.totalorder %v315, 7
    %317 = vst.msk [vmem:[%s304] sm:$0xff] %vm316, %v313
    // Predicated region
    $region36: #{reverse.1} parent=1 // pred_check
      _
    $region37: #{reverse.1} parent=1 // pred_check_branch
      %319 = sbr.rel (0) target = $region39
    $region38: #{reverse.1} parent=1 // pred_region
      // Predicated region
      $region40: #{reverse.1} parent=38 // pred_check
        _
      $region41: #{reverse.1} parent=38 // pred_check_branch
        %321 = sbr.rel (0) target = $region43
      $region42: #{reverse.1} parent=38 // pred_region
        // Predicated region
        $region55: #{reverse.1} parent=42 // pred_check
          _
        $region56: #{reverse.1} parent=42 // pred_check_branch
          %367 = sbr.rel (0) target = $region58
        $region57: #{reverse.1} parent=42 // pred_region
          loop: start=0, step=1, limit=1
          $region59: #{reverse.1} parent=57 // loop_pre_header
            _
          $region60: #{reverse.1} parent=57 // loop_header
            %s369 = sphi 0, %s373
            %p370 = scmp.ge.s32.totalorder %s369, 1
            %s374 = sphi [#allocation1], [#allocation1]
            %s375 = sphi %s1, %s1
          $region61: #{reverse.1} parent=57 // loop_header_branch
            %372 = sbr.rel (%p370) target = $region65
          $region62: #{reverse.1} parent=57 // loop_body
            %v376 = vld [vmem:[%s374] sm:$0xff]
            %377 = vst [vmem:[%s375] sm:$0xff] %v376
            %v378 = vld [vmem:[%s374 + $0x8] sm:$0xff]
            %379 = vst [vmem:[%s375 + $0x8] sm:$0xff] %v378
            %v380 = vld [vmem:[%s374 + $0x10] sm:$0xff]
            %381 = vst [vmem:[%s375 + $0x10] sm:$0xff] %v380
            %v382 = vld [vmem:[%s374 + $0x18] sm:$0xff]
            %383 = vst [vmem:[%s375 + $0x18] sm:$0xff] %v382
            %v384 = vld [vmem:[%s374 + $0x20] sm:$0xff]
            %385 = vst [vmem:[%s375 + $0x20] sm:$0xff] %v384
            %v386 = vld [vmem:[%s374 + $0x28] sm:$0xff]
            %387 = vst [vmem:[%s375 + $0x28] sm:$0xff] %v386
            %v388 = vld [vmem:[%s374 + $0x30] sm:$0xff]
            %389 = vst [vmem:[%s375 + $0x30] sm:$0xff] %v388
            %v390 = vld [vmem:[%s374 + $0x38] sm:$0xff]
            %391 = vst [vmem:[%s375 + $0x38] sm:$0xff] %v390
            %v392 = vld [vmem:[%s374 + $0x40] sm:$0xff]
            %393 = vst [vmem:[%s375 + $0x40] sm:$0xff] %v392
            %v394 = vld [vmem:[%s374 + $0x48] sm:$0xff]
            %395 = vst [vmem:[%s375 + $0x48] sm:$0xff] %v394
            %v396 = vld [vmem:[%s374 + $0x50] sm:$0xff]
            %397 = vst [vmem:[%s375 + $0x50] sm:$0xff] %v396
            %v398 = vld [vmem:[%s374 + $0x58] sm:$0xff]
            %399 = vst [vmem:[%s375 + $0x58] sm:$0xff] %v398
            %v400 = vld [vmem:[%s374 + $0x60] sm:$0xff]
            %401 = vst [vmem:[%s375 + $0x60] sm:$0xff] %v400
            %v402 = vld [vmem:[%s374 + $0x68] sm:$0xff]
            %403 = vst [vmem:[%s375 + $0x68] sm:$0xff] %v402
            %v404 = vld [vmem:[%s374 + $0x70] sm:$0xff]
            %405 = vst [vmem:[%s375 + $0x70] sm:$0xff] %v404
            %v406 = vld [vmem:[%s374 + $0x78] sm:$0xff]
            %407 = vst [vmem:[%s375 + $0x78] sm:$0xff] %v406
          $region63: #{reverse.1} parent=57 // loop_footer
            %s373 = sadd.s32 1, %s369
          $region64: #{reverse.1} parent=57 // loop_footer_branch
            %368 = sbr.rel target = $region60
          $region65: #{reverse.1} parent=57 // loop_exit
            _
        $region58: #{reverse.1} parent=42 // pred_fallthru
          _
        // Predicated region
        $region66: #{reverse.1} parent=42 // pred_check
          _
        $region67: #{reverse.1} parent=42 // pred_check_branch
          %409 = sbr.rel target = $region69
        $region68: #{reverse.1} parent=42 // pred_region
          _
        $region69: #{reverse.1} parent=42 // pred_fallthru
          _
      $region43: #{reverse.1} parent=38 // pred_fallthru
        _
      // Predicated region
      $region44: #{reverse.1} parent=38 // pred_check
        _
      $region45: #{reverse.1} parent=38 // pred_check_branch
        %323 = sbr.rel target = $region47
      $region46: #{reverse.1} parent=38 // pred_region
        %s325 = ssub.s32 256, 1
        loop: start=0, step=1, limit=1
        $region48: #{reverse.1} parent=46 // loop_pre_header
          _
        $region49: #{reverse.1} parent=46 // loop_header
          %s327 = sphi 0, %s331
          %p328 = scmp.ge.s32.totalorder %s327, 1
          %s332 = sphi [#allocation1], [#allocation1]
          %s333 = sphi %s1, %s1
        $region50: #{reverse.1} parent=46 // loop_header_branch
          %330 = sbr.rel (%p328) target = $region54
        $region51: #{reverse.1} parent=46 // loop_body
          %v334 = vld [vmem:[%s332] sm:%s325]
          %335 = vst [vmem:[%s333] sm:%s325] %v334
          %v336 = vld [vmem:[%s332 + $0x8] sm:%s325]
          %337 = vst [vmem:[%s333 + $0x8] sm:%s325] %v336
          %v338 = vld [vmem:[%s332 + $0x10] sm:%s325]
          %339 = vst [vmem:[%s333 + $0x10] sm:%s325] %v338
          %v340 = vld [vmem:[%s332 + $0x18] sm:%s325]
          %341 = vst [vmem:[%s333 + $0x18] sm:%s325] %v340
          %v342 = vld [vmem:[%s332 + $0x20] sm:%s325]
          %343 = vst [vmem:[%s333 + $0x20] sm:%s325] %v342
          %v344 = vld [vmem:[%s332 + $0x28] sm:%s325]
          %345 = vst [vmem:[%s333 + $0x28] sm:%s325] %v344
          %v346 = vld [vmem:[%s332 + $0x30] sm:%s325]
          %347 = vst [vmem:[%s333 + $0x30] sm:%s325] %v346
          %v348 = vld [vmem:[%s332 + $0x38] sm:%s325]
          %349 = vst [vmem:[%s333 + $0x38] sm:%s325] %v348
          %v350 = vld [vmem:[%s332 + $0x40] sm:%s325]
          %351 = vst [vmem:[%s333 + $0x40] sm:%s325] %v350
          %v352 = vld [vmem:[%s332 + $0x48] sm:%s325]
          %353 = vst [vmem:[%s333 + $0x48] sm:%s325] %v352
          %v354 = vld [vmem:[%s332 + $0x50] sm:%s325]
          %355 = vst [vmem:[%s333 + $0x50] sm:%s325] %v354
          %v356 = vld [vmem:[%s332 + $0x58] sm:%s325]
          %357 = vst [vmem:[%s333 + $0x58] sm:%s325] %v356
          %v358 = vld [vmem:[%s332 + $0x60] sm:%s325]
          %359 = vst [vmem:[%s333 + $0x60] sm:%s325] %v358
          %v360 = vld [vmem:[%s332 + $0x68] sm:%s325]
          %361 = vst [vmem:[%s333 + $0x68] sm:%s325] %v360
          %v362 = vld [vmem:[%s332 + $0x70] sm:%s325]
          %363 = vst [vmem:[%s333 + $0x70] sm:%s325] %v362
          %v364 = vld [vmem:[%s332 + $0x78] sm:%s325]
          %365 = vst [vmem:[%s333 + $0x78] sm:%s325] %v364
        $region52: #{reverse.1} parent=46 // loop_footer
          %s331 = sadd.s32 1, %s327
        $region53: #{reverse.1} parent=46 // loop_footer_branch
          %326 = sbr.rel target = $region49
        $region54: #{reverse.1} parent=46 // loop_exit
          _
      $region47: #{reverse.1} parent=38 // pred_fallthru
        _
    $region39: #{reverse.1} parent=1 // pred_fallthru
      _
    %410 = vnop

// kernel: sfb_forward.5
$region0: #{sfb_forward.5}
  #allocation0 [shape = 'u32[]', space=smem, size = 0x4, offset = 0x4, fixed_abs, tag = 'smem constant byte address 0x4 - core index']
  #allocation1 [shape = 'u32[72,128]{1,0:T(1,128)}', space=vmem, size = 0x9000, scoped, tag = 'internal scratch']
  %s0 = inlined_call_operand.vmem [shape: f32[2,8,256], index: 0, kind: input, shape index: {}]
  %s1 = inlined_call_operand.vmem [shape: f32[2,8,256], index: 1, kind: input, shape index: {}]
  %s2 = inlined_call_operand.vmem [shape: f32[2,8,256], index: 2, kind: input, shape index: {}]
  %s3 = inlined_call_operand.vmem [shape: f32[8,8], index: 3, kind: input, shape index: {}]
  %s4 = inlined_call_operand.vmem [shape: f32[8,8], index: 4, kind: input, shape index: {}]
  %s5 = inlined_call_operand.vmem [shape: f32[8,1], index: 5, kind: input, shape index: {}]
  %s6 = inlined_call_operand.vmem [shape: f32[2,8,256], index: 6, kind: output, shape index: {}]
  %s7 = sld [smem:[#allocation0]]
  $region57: #{sfb_forward.5} parent=0
    _
  %s9 = ssub.s32 1, %s7
  %s10 = scalar_select 0, %s9, %s7
  loop: start=0, step=1, limit=4
  $region2: #{sfb_forward.5} parent=0 // loop_pre_header
    _
  $region3: #{sfb_forward.5} parent=0 // loop_header
    %s12 = sphi 0, %s16
    %p13 = scmp.ge.s32.totalorder %s12, 4
    %s22 = sphi 0, %s24
    %s25 = sphi 0, %s22
    %s26 = sphi 0, %s25
    %s42 = sphi 0, %s26
    %s48 = sphi 0, %s50
    %s51 = sphi 0, %s48
    %s52 = sphi 0, %s51
    %s68 = sphi 0, %s52
    %s74 = sphi 0, %s76
    %s77 = sphi 0, %s74
    %s78 = sphi 0, %s77
    %s94 = sphi 0, %s78
    %s98 = sphi 0, %s98
    %s100 = sphi 0, %s98
    %s101 = sphi 0, %s100
    %s115 = sphi 0, %s101
    %s119 = sphi 0, %s119
    %s121 = sphi 0, %s119
    %s122 = sphi 0, %s121
    %s136 = sphi 0, %s122
    %s140 = sphi 0, %s140
    %s142 = sphi 0, %s140
    %s143 = sphi 0, %s142
    %s157 = sphi 0, %s143
    %s163 = sphi 0, %s165
    %s166 = sphi 0, %s163
    %s167 = sphi 0, %s166
    %s183 = sphi 0, %s167
  $region4: #{sfb_forward.5} parent=0 // loop_header_branch
    %15 = sbr.rel (%p13) target = $region8
  $region5: #{sfb_forward.5} parent=0 // loop_body
    %s17 = ssub.s32 %s12, 1
    %s18 = ssub.s32 %s12, 2
    %s19 = sadd.s32 %s12, 1
    %s20 = ssub.s32 %s12, %s19
    %p21 = scmp.eq.s32.totalorder %s20, 0
    %s23 = sadd.s32 %s22, 1
    %s24 = scalar_select %p21, %s22, %s23
    %p27 = pneg %p21
    %p28 = scmp.eq.s32.totalorder %s12, 1
    %p29 = por %p27, %p28
    %p30 = scmp.ne.s32.totalorder %s22, %s25
    %p31 = scmp.eq.s32.totalorder %s12, 0
    %p32 = por %p30, %p31
    %p33 = scmp.ne.s32.totalorder %s22, %s25
    %p34 = scmp.eq.s32.totalorder %s17, 1
    %p35 = por %p33, %p34
    %p36 = scmp.ne.s32.totalorder %s25, %s26
    %p37 = scmp.eq.s32.totalorder %s17, 0
    %p38 = por %p36, %p37
    %p39 = scmp.ne.s32.totalorder %s25, %s26
    %p40 = scmp.eq.s32.totalorder %s18, 1
    %p41 = por %p39, %p40
    %p43 = scmp.ne.s32.totalorder %s26, %s42
    %p44 = scmp.eq.s32.totalorder %s18, 0
    %p45 = por %p43, %p44
    %s46 = ssub.s32 %s12, %s19
    %p47 = scmp.eq.s32.totalorder %s46, 0
    %s49 = sadd.s32 %s48, 1
    %s50 = scalar_select %p47, %s48, %s49
    %p53 = pneg %p47
    %p54 = scmp.eq.s32.totalorder %s12, 1
    %p55 = por %p53, %p54
    %p56 = scmp.ne.s32.totalorder %s48, %s51
    %p57 = scmp.eq.s32.totalorder %s12, 0
    %p58 = por %p56, %p57
    %p59 = scmp.ne.s32.totalorder %s48, %s51
    %p60 = scmp.eq.s32.totalorder %s17, 1
    %p61 = por %p59, %p60
    %p62 = scmp.ne.s32.totalorder %s51, %s52
    %p63 = scmp.eq.s32.totalorder %s17, 0
    %p64 = por %p62, %p63
    %p65 = scmp.ne.s32.totalorder %s51, %s52
    %p66 = scmp.eq.s32.totalorder %s18, 1
    %p67 = por %p65, %p66
    %p69 = scmp.ne.s32.totalorder %s52, %s68
    %p70 = scmp.eq.s32.totalorder %s18, 0
    %p71 = por %p69, %p70
    %s72 = ssub.s32 %s12, %s19
    %p73 = scmp.eq.s32.totalorder %s72, 0
    %s75 = sadd.s32 %s74, 1
    %s76 = scalar_select %p73, %s74, %s75
    %p79 = pneg %p73
    %p80 = scmp.eq.s32.totalorder %s12, 1
    %p81 = por %p79, %p80
    %p82 = scmp.ne.s32.totalorder %s74, %s77
    %p83 = scmp.eq.s32.totalorder %s12, 0
    %p84 = por %p82, %p83
    %p85 = scmp.ne.s32.totalorder %s74, %s77
    %p86 = scmp.eq.s32.totalorder %s17, 1
    %p87 = por %p85, %p86
    %p88 = scmp.ne.s32.totalorder %s77, %s78
    %p89 = scmp.eq.s32.totalorder %s17, 0
    %p90 = por %p88, %p89
    %p91 = scmp.ne.s32.totalorder %s77, %s78
    %p92 = scmp.eq.s32.totalorder %s18, 1
    %p93 = por %p91, %p92
    %p95 = scmp.ne.s32.totalorder %s78, %s94
    %p96 = scmp.eq.s32.totalorder %s18, 0
    %p97 = por %p95, %p96
    %s99 = sadd.s32 %s98, 1
    %p102 = scmp.eq.s32.totalorder %s12, 1
    %p103 = scmp.ne.s32.totalorder %s98, %s100
    %p104 = scmp.eq.s32.totalorder %s12, 0
    %p105 = por %p103, %p104
    %p106 = scmp.ne.s32.totalorder %s98, %s100
    %p107 = scmp.eq.s32.totalorder %s17, 1
    %p108 = por %p106, %p107
    %p109 = scmp.ne.s32.totalorder %s100, %s101
    %p110 = scmp.eq.s32.totalorder %s17, 0
    %p111 = por %p109, %p110
    %p112 = scmp.ne.s32.totalorder %s100, %s101
    %p113 = scmp.eq.s32.totalorder %s18, 1
    %p114 = por %p112, %p113
    %p116 = scmp.ne.s32.totalorder %s101, %s115
    %p117 = scmp.eq.s32.totalorder %s18, 0
    %p118 = por %p116, %p117
    %s120 = sadd.s32 %s119, 1
    %p123 = scmp.eq.s32.totalorder %s12, 1
    %p124 = scmp.ne.s32.totalorder %s119, %s121
    %p125 = scmp.eq.s32.totalorder %s12, 0
    %p126 = por %p124, %p125
    %p127 = scmp.ne.s32.totalorder %s119, %s121
    %p128 = scmp.eq.s32.totalorder %s17, 1
    %p129 = por %p127, %p128
    %p130 = scmp.ne.s32.totalorder %s121, %s122
    %p131 = scmp.eq.s32.totalorder %s17, 0
    %p132 = por %p130, %p131
    %p133 = scmp.ne.s32.totalorder %s121, %s122
    %p134 = scmp.eq.s32.totalorder %s18, 1
    %p135 = por %p133, %p134
    %p137 = scmp.ne.s32.totalorder %s122, %s136
    %p138 = scmp.eq.s32.totalorder %s18, 0
    %p139 = por %p137, %p138
    %s141 = sadd.s32 %s140, 1
    %p144 = scmp.eq.s32.totalorder %s12, 1
    %p145 = scmp.ne.s32.totalorder %s140, %s142
    %p146 = scmp.eq.s32.totalorder %s12, 0
    %p147 = por %p145, %p146
    %p148 = scmp.ne.s32.totalorder %s140, %s142
    %p149 = scmp.eq.s32.totalorder %s17, 1
    %p150 = por %p148, %p149
    %p151 = scmp.ne.s32.totalorder %s142, %s143
    %p152 = scmp.eq.s32.totalorder %s17, 0
    %p153 = por %p151, %p152
    %p154 = scmp.ne.s32.totalorder %s142, %s143
    %p155 = scmp.eq.s32.totalorder %s18, 1
    %p156 = por %p154, %p155
    %p158 = scmp.ne.s32.totalorder %s143, %s157
    %p159 = scmp.eq.s32.totalorder %s18, 0
    %p160 = por %p158, %p159
    %s161 = ssub.s32 %s12, %s19
    %p162 = scmp.eq.s32.totalorder %s161, 0
    %s164 = sadd.s32 %s163, 1
    %s165 = scalar_select %p162, %s163, %s164
    %p168 = pneg %p162
    %p169 = scmp.eq.s32.totalorder %s12, 1
    %p170 = por %p168, %p169
    %p171 = scmp.ne.s32.totalorder %s163, %s166
    %p172 = scmp.eq.s32.totalorder %s12, 0
    %p173 = por %p171, %p172
    %p174 = scmp.ne.s32.totalorder %s163, %s166
    %p175 = scmp.eq.s32.totalorder %s17, 1
    %p176 = por %p174, %p175
    %p177 = scmp.ne.s32.totalorder %s166, %s167
    %p178 = scmp.eq.s32.totalorder %s17, 0
    %p179 = por %p177, %p178
    %p180 = scmp.ne.s32.totalorder %s166, %s167
    %p181 = scmp.eq.s32.totalorder %s18, 1
    %p182 = por %p180, %p181
    %p184 = scmp.ne.s32.totalorder %s167, %s183
    %p185 = scmp.eq.s32.totalorder %s18, 0
    %p186 = por %p184, %p185
    %p187 = scmp.le.s32.totalorder 1, %s12
    %p188 = scmp.lt.s32.totalorder %s12, 3
    %p189 = pnand %p187, %p188
    %p190 = pneg %p189
    // Predicated region
    $region9: #{sfb_forward.5} parent=5 // pred_check
      _
    $region10: #{sfb_forward.5} parent=5 // pred_check_branch
      %192 = sbr.rel (%p189) target = $region12
    $region11: #{sfb_forward.5} parent=5 // pred_region
      %s193 = ssub.s32 %s12, 1
      // Predicated region
      $region13: #{sfb_forward.5} parent=11 // pred_check
        %p194 = pneg %p111
      $region14: #{sfb_forward.5} parent=11 // pred_check_branch
        %196 = sbr.rel (%p194) target = $region16
      $region15: #{sfb_forward.5} parent=11 // pred_region
        _
      $region16: #{sfb_forward.5} parent=11 // pred_fallthru
        _
      // Predicated region
      $region17: #{sfb_forward.5} parent=11 // pred_check
        %p197 = pneg %p132
      $region18: #{sfb_forward.5} parent=11 // pred_check_branch
        %199 = sbr.rel (%p197) target = $region20
      $region19: #{sfb_forward.5} parent=11 // pred_region
        _
      $region20: #{sfb_forward.5} parent=11 // pred_fallthru
        _
      // Predicated region
      $region21: #{sfb_forward.5} parent=11 // pred_check
        %p200 = pneg %p153
      $region22: #{sfb_forward.5} parent=11 // pred_check_branch
        %202 = sbr.rel (%p200) target = $region24
      $region23: #{sfb_forward.5} parent=11 // pred_region
        _
      $region24: #{sfb_forward.5} parent=11 // pred_fallthru
        _
    $region12: #{sfb_forward.5} parent=5 // pred_fallthru
      _
    %p203 = scmp.lt.s32.totalorder %s12, 2
    // Predicated region
    $region25: #{sfb_forward.5} parent=5 // pred_check
      %p204 = pneg %p203
    $region26: #{sfb_forward.5} parent=5 // pred_check_branch
      %206 = sbr.rel (%p204) target = $region28
    $region27: #{sfb_forward.5} parent=5 // pred_region
      // Predicated region
      $region29: #{sfb_forward.5} parent=27 // pred_check
        %p207 = pneg %p32
      $region30: #{sfb_forward.5} parent=27 // pred_check_branch
        %209 = sbr.rel (%p207) target = $region32
      $region31: #{sfb_forward.5} parent=27 // pred_region
        %p210 = scmp.lt.s32.totalorder %s12, 1
        %s211 = scalar_select %p210, %s12, 1
        %s212 = smul.addr %s211, 2
        %s213 = smul.addr %s212, 8
        %s214 = scalar_lea.vmem %s0, %s213
      $region32: #{sfb_forward.5} parent=27 // pred_fallthru
        _
      // Predicated region
      $region33: #{sfb_forward.5} parent=27 // pred_check
        %p215 = pneg %p58
      $region34: #{sfb_forward.5} parent=27 // pred_check_branch
        %217 = sbr.rel (%p215) target = $region36
      $region35: #{sfb_forward.5} parent=27 // pred_region
        %p218 = scmp.lt.s32.totalorder %s12, 1
        %s219 = scalar_select %p218, %s12, 1
        %s220 = smul.addr %s219, 2
        %s221 = smul.addr %s220, 8
        %s222 = scalar_lea.vmem %s1, %s221
      $region36: #{sfb_forward.5} parent=27 // pred_fallthru
        _
      // Predicated region
      $region37: #{sfb_forward.5} parent=27 // pred_check
        %p223 = pneg %p84
      $region38: #{sfb_forward.5} parent=27 // pred_check_branch
        %225 = sbr.rel (%p223) target = $region40
      $region39: #{sfb_forward.5} parent=27 // pred_region
        %p226 = scmp.lt.s32.totalorder %s12, 1
        %s227 = scalar_select %p226, %s12, 1
        %s228 = smul.addr %s227, 2
        %s229 = smul.addr %s228, 8
        %s230 = scalar_lea.vmem %s2, %s229
      $region40: #{sfb_forward.5} parent=27 // pred_fallthru
        _
    $region28: #{sfb_forward.5} parent=5 // pred_fallthru
      _
    %p231 = scmp.le.s32.totalorder 1, %s12
    %p232 = scmp.lt.s32.totalorder %s12, 3
    %p233 = pnand %p231, %p232
    %p234 = pneg %p233
    // Predicated region
    $region41: #{sfb_forward.5} parent=5 // pred_check
      _
    $region42: #{sfb_forward.5} parent=5 // pred_check_branch
      %236 = sbr.rel (%p233) target = $region44
    $region43: #{sfb_forward.5} parent=5 // pred_region
      %s237 = ssub.s32 %s12, 1
      %p238 = scmp.lt.s32.totalorder %s17, 1
      %s239 = scalar_select %p238, %s17, 1
      %s240 = smul.addr %s239, 2
      %s241 = smul.addr %s240, 8
      %s242 = scalar_lea.vmem %s0, %s241
      %p243 = pneg %p38
      %p244 = pneg %p35
      %p245 = scmp.lt.s32.totalorder %s17, 1
      %s246 = scalar_select %p245, %s17, 1
      %s247 = smul.addr %s246, 2
      %s248 = smul.addr %s247, 8
      %s249 = scalar_lea.vmem %s1, %s248
      %p250 = pneg %p64
      %p251 = pneg %p61
      %p252 = scmp.lt.s32.totalorder %s17, 1
      %s253 = scalar_select %p252, %s17, 1
      %s254 = smul.addr %s253, 2
      %s255 = smul.addr %s254, 8
      %s256 = scalar_lea.vmem %s2, %s255
      %p257 = pneg %p90
      %p258 = pneg %p87
      %p259 = pneg %p111
      %p260 = pneg %p108
      %p261 = pneg %p132
      %p262 = pneg %p129
      %p263 = pneg %p153
      %p264 = pneg %p150
      %p265 = pneg %p179
      %p266 = pneg %p176
      %p267 = scmp.lt.s32.totalorder %s17, 1
      %s268 = scalar_select %p267, %s17, 1
      %s269 = smul.addr %s268, 2
      %s270 = smul.addr %s269, 8
      %s271 = scalar_lea.vmem %s6, %s270
      %p272 = scmp.lt.s32.totalorder %s17, 1
      %s273 = scalar_select %p272, %s17, 1
      %s274 = smul.addr %s273, 2
      %s275 = smul.addr %s274, 8
      %s276 = scalar_lea.vmem %s0, %s275
      %p277 = scmp.lt.s32.totalorder %s17, 1
      %s278 = scalar_select %p277, %s17, 1
      %s279 = smul.addr %s278, 2
      %s280 = smul.addr %s279, 8
      %s281 = scalar_lea.vmem %s1, %s280
      %p282 = scmp.lt.s32.totalorder %s17, 1
      %s283 = scalar_select %p282, %s17, 1
      %s284 = smul.addr %s283, 2
      %s285 = smul.addr %s284, 8
      %s286 = scalar_lea.vmem %s2, %s285
      %p287 = scmp.lt.s32.totalorder %s17, 1
      %s288 = scalar_select %p287, %s17, 1
      %s289 = smul.addr %s288, 2
      %s290 = smul.addr %s289, 8
      %s291 = scalar_lea.vmem %s6, %s290
      %v292 = vld [vmem:[%s3] sm:$0xff]
      %v293 = vld [vmem:[%s276] sm:$0xff]
      %v294 = vld [vmem:[%s276 + $0x8] sm:$0xff]
      %v295 = vld [vmem:[%s281] sm:$0xff]
      %v296 = vld [vmem:[%s281 + $0x8] sm:$0xff]
      %v297 = vld [vmem:[%s286] sm:$0xff]
      %v298 = vld [vmem:[%s286 + $0x8] sm:$0xff]
      %v299 = vadd.f32 %v295, %v297
      %v300 = vadd.f32 %v296, %v298
      %v301 = vld [vmem:[%s4] sm:$0xff]
      %vm302 = vcmask 64512
      %v304 = vsel %vm302, %v301, 0
      %306 = vmatpush.msra.mxu0 0.0
      %307 = vmatpush.msra.mxu0 0.0
      %308 = vmatpush.msra.mxu0 0.0
      %309 = vmatpush.msra.mxu0 0.0
      %310 = vmatpush.msra.mxu0 0.0
      %311 = vmatpush.msra.mxu0 0.0
      %312 = vmatpush.msra.mxu0 0.0
      %313 = vmatpush.msra.mxu0 0.0
      %314 = vmatpush.msra.mxu0 0.0
      %315 = vmatpush.msra.mxu0 0.0
      %316 = vmatpush.msra.mxu0 0.0
      %317 = vmatpush.msra.mxu0 0.0
      %318 = vmatpush.msra.mxu0 0.0
      %319 = vmatpush.msra.mxu0 0.0
      %320 = vmatpush.msra.mxu0 0.0
      %321 = vmatpush.msra.mxu0 %v299
      %322 = vmatmul.f32.gmra.mxu0 %v304
      %v323 = vpop.f32.mrf.mxu0
      %v324 = vadd.f32 0.0, %v323
      %325 = vdwg.mxu0
      %326 = vmatpush.msra.mxu0 0.0
      %327 = vmatpush.msra.mxu0 0.0
      %328 = vmatpush.msra.mxu0 0.0
      %329 = vmatpush.msra.mxu0 0.0
      %330 = vmatpush.msra.mxu0 0.0
      %331 = vmatpush.msra.mxu0 0.0
      %332 = vmatpush.msra.mxu0 0.0
      %333 = vmatpush.msra.mxu0 0.0
      %334 = vmatpush.msra.mxu0 0.0
      %335 = vmatpush.msra.mxu0 0.0
      %336 = vmatpush.msra.mxu0 0.0
      %337 = vmatpush.msra.mxu0 0.0
      %338 = vmatpush.msra.mxu0 0.0
      %339 = vmatpush.msra.mxu0 0.0
      %340 = vmatpush.msra.mxu0 0.0
      %341 = vmatpush.msra.mxu0 %v300
      %342 = vmatmul.f32.gmra.mxu0 %v304
      %v343 = vpop.f32.mrf.mxu0
      %v344 = vadd.f32 0.0, %v343
      %345 = vdwg.mxu0
      %v347 = vsel %vm302, %v292, 0
      %349 = vmatpush.msra.mxu0 0.0
      %350 = vmatpush.msra.mxu0 0.0
      %351 = vmatpush.msra.mxu0 0.0
      %352 = vmatpush.msra.mxu0 0.0
      %353 = vmatpush.msra.mxu0 0.0
      %354 = vmatpush.msra.mxu0 0.0
      %355 = vmatpush.msra.mxu0 0.0
      %356 = vmatpush.msra.mxu0 0.0
      %357 = vmatpush.msra.mxu0 0.0
      %358 = vmatpush.msra.mxu0 0.0
      %359 = vmatpush.msra.mxu0 0.0
      %360 = vmatpush.msra.mxu0 0.0
      %361 = vmatpush.msra.mxu0 0.0
      %362 = vmatpush.msra.mxu0 0.0
      %363 = vmatpush.msra.mxu0 0.0
      %364 = vmatpush.msra.mxu0 %v293
      %365 = vmatmul.f32.gmra.mxu0 %v347
      %v366 = vpop.f32.mrf.mxu0
      %v367 = vadd.f32 %v324, %v366
      %368 = vdwg.mxu0
      %369 = vmatpush.msra.mxu0 0.0
      %370 = vmatpush.msra.mxu0 0.0
      %371 = vmatpush.msra.mxu0 0.0
      %372 = vmatpush.msra.mxu0 0.0
      %373 = vmatpush.msra.mxu0 0.0
      %374 = vmatpush.msra.mxu0 0.0
      %375 = vmatpush.msra.mxu0 0.0
      %376 = vmatpush.msra.mxu0 0.0
      %377 = vmatpush.msra.mxu0 0.0
      %378 = vmatpush.msra.mxu0 0.0
      %379 = vmatpush.msra.mxu0 0.0
      %380 = vmatpush.msra.mxu0 0.0
      %381 = vmatpush.msra.mxu0 0.0
      %382 = vmatpush.msra.mxu0 0.0
      %383 = vmatpush.msra.mxu0 0.0
      %384 = vmatpush.msra.mxu0 %v294
      %385 = vmatmul.f32.gmra.mxu0 %v347
      %v386 = vpop.f32.mrf.mxu0
      %v387 = vadd.f32 %v344, %v386
      %388 = vdwg.mxu0
      %v389 = vld [vmem:[%s5] sm:$0xff]
      %391 = vset.pattern.permute.xlu0 0
      %392 = vperm.xlu0 %391, %v389
      %v393 = vpop.permute.xlu0 %392
      %v395 = vadd.f32 %v367, %v393
      %v396 = vadd.f32 %v387, %v393
      %397 = vst [vmem:[%s291] sm:$0xff] %v395
      %398 = vst [vmem:[%s291 + $0x8] sm:$0xff] %v396
      %p399 = scmp.lt.s32.totalorder %s17, 1
      %s400 = scalar_select %p399, %s17, 1
      %s401 = smul.addr %s400, 2
      %s402 = smul.addr %s401, 8
      %s403 = scalar_lea.vmem %s6, %s402
      // Predicated region
      $region45: #{sfb_forward.5} parent=43 // pred_check
        %p404 = pneg %p176
      $region46: #{sfb_forward.5} parent=43 // pred_check_branch
        %406 = sbr.rel (%p404) target = $region48
      $region47: #{sfb_forward.5} parent=43 // pred_region
        _
      $region48: #{sfb_forward.5} parent=43 // pred_fallthru
        _
    $region44: #{sfb_forward.5} parent=5 // pred_fallthru
      _
    %p407 = scmp.le.s32.totalorder 2, %s12
    // Predicated region
    $region49: #{sfb_forward.5} parent=5 // pred_check
      %p408 = pneg %p407
    $region50: #{sfb_forward.5} parent=5 // pred_check_branch
      %410 = sbr.rel (%p408) target = $region52
    $region51: #{sfb_forward.5} parent=5 // pred_region
      %s411 = ssub.s32 %s12, 2
      // Predicated region
      $region53: #{sfb_forward.5} parent=51 // pred_check
        %p412 = pneg %p182
      $region54: #{sfb_forward.5} parent=51 // pred_check_branch
        %414 = sbr.rel (%p412) target = $region56
      $region55: #{sfb_forward.5} parent=51 // pred_region
        %p415 = scmp.lt.s32.totalorder %s18, 1
        %s416 = scalar_select %p415, %s18, 1
        %s417 = smul.addr %s416, 2
        %s418 = smul.addr %s417, 8
        %s419 = scalar_lea.vmem %s6, %s418
      $region56: #{sfb_forward.5} parent=51 // pred_fallthru
        _
    $region52: #{sfb_forward.5} parent=5 // pred_fallthru
      _
  $region6: #{sfb_forward.5} parent=0 // loop_footer
    %s16 = sadd.s32 1, %s12
  $region7: #{sfb_forward.5} parent=0 // loop_footer_branch
    %11 = sbr.rel target = $region3
  $region8: #{sfb_forward.5} parent=0 // loop_exit
    _

</llo_original>
